<compile_context>
chip_gen: v7x
topology: tpu7x:2x2x1
jax: 0.10.0
libtpu: 0.0.40
codegen_flags: <defaults>
</compile_context>

<pallas_src>
import functools

import jax
import jax.numpy as jnp
from jax.experimental import pallas as pl
from jax.experimental.pallas import tpu as pltpu


def _fine_scorer_kernel(idx_ref,                      # scalar-prefetch: flat indices (SMEM)
                        emb_ref, feat_ref, scores_ref,
                        w1a_ref, w1b_ref, w1c_ref, w1f_ref, b1_ref,
                        w2_ref, b2_ref, all_emb_ref,  # b2 in SMEM, all_emb in HBM (ANY)
                        out_ref,
                        bbuf, sem):
    # Per-tile shapes:
    #   emb_ref    (TW, E)        feat_ref  (TW*A, F)    scores_ref (TW, A)
    #   bbuf       (TW*A, E)      out_ref   (TW, A+1)
    tw, e_dim = emb_ref.shape
    a_dim = scores_ref.shape[1]
    rows = bbuf.shape[0]                              # = tw * a_dim
    base = pl.program_id(0) * rows

    # ---- 1. Kick off the antecedent-row gather: HBM -> VMEM, one row per pair.
    def _start(r, carry):
        row_idx = idx_ref[base + r]
        pltpu.make_async_copy(all_emb_ref.at[row_idx], bbuf.at[r], sem.at[0]).start()
        return carry
    jax.lax.fori_loop(0, rows, _start, 0)

    # ---- 2. Work that does not need b (overlaps with the gather DMAs).
    a = emb_ref[...]                                                  # (TW, E)
    aw = jnp.dot(a, w1a_ref[...], preferred_element_type=jnp.float32)  # (TW, E)  hoisted
    hf = jnp.dot(feat_ref[...], w1f_ref[...],
                 preferred_element_type=jnp.float32)                  # (TW*A, E)

    # ---- 3. Wait for all gathered rows (same-shaped descriptors, shared sem).
    def _wait(r, carry):
        pltpu.make_async_copy(all_emb_ref.at[0], bbuf.at[r], sem.at[0]).wait()
        return carry
    jax.lax.fori_loop(0, rows, _wait, 0)

    # ---- 4. Antecedent-dependent matmuls (split form of concat @ W1).
    b2d = bbuf[...]                                                   # (TW*A, E)
    ab2d = (a[:, None, :] * b2d.reshape(tw, a_dim, e_dim)).reshape(rows, e_dim)

    h = (jnp.dot(b2d, w1b_ref[...], preferred_element_type=jnp.float32)
         + jnp.dot(ab2d, w1c_ref[...], preferred_element_type=jnp.float32)
         + hf + b1_ref[...])                                          # (TW*A, E)
    h3 = h.reshape(tw, a_dim, e_dim) + aw[:, None, :]                 # add hoisted a@W1a
    # LeakyReLU (PyTorch default slope 0.01); Dropout is identity in eval mode.
    h3 = jnp.where(h3 > 0, h3, 0.01 * h3)

    # ---- 5. Output linear E -> 1 as VPU multiply + lane reduction (no N=1 MXU).
    sc = jnp.sum(h3 * w2_ref[...], axis=-1) + b2_ref[0]               # (TW, A)

    res = scores_ref[...] + sc
    out_ref[:, pl.ds(1, a_dim)] = res
    out_ref[:, pl.ds(0, 1)] = jnp.full((tw, 1), 1e-7, dtype=out_ref.dtype)


@functools.partial(jax.jit, static_argnames=("tile_w",))
def fine_scorer_forward(all_embeddings, embeddings, features, indices, scores,
                        params, *, tile_w=16):
    """FineScorer.forward (main branch) — returns [n_words, n_ants + 1]."""
    n_words, e_dim = embeddings.shape
    n_ants = features.shape[1]
    f_dim = features.shape[2]
    assert tile_w % 8 == 0, "tile_w must be a multiple of 8 (sublane tiling)"
    assert n_words % tile_w == 0, "pad n_words to a multiple of tile_w"
    rows = tile_w * n_ants

    w1a, w1b, w1c, w1f, b1, w2, b2 = params

    # Glue reshapes (contiguous -> free): flat indices for SMEM scalar prefetch,
    # features flattened to (n_words*n_ants, F) so each tile is a dense row block.
    idx_flat = indices.reshape(-1).astype(jnp.int32)
    feat2d = features.reshape(n_words * n_ants, f_dim)

    grid_spec = pltpu.PrefetchScalarGridSpec(
        num_scalar_prefetch=1,                        # idx_flat -> SMEM
        grid=(n_words // tile_w,),
        in_specs=[
            pl.BlockSpec((tile_w, e_dim), lambda i, idx: (i, 0)),        # embeddings
            pl.BlockSpec((rows, f_dim), lambda i, idx: (i, 0)),          # features (flat)
            pl.BlockSpec((tile_w, n_ants), lambda i, idx: (i, 0)),       # scores
            pl.BlockSpec((e_dim, e_dim), lambda i, idx: (0, 0)),         # W1a
            pl.BlockSpec((e_dim, e_dim), lambda i, idx: (0, 0)),         # W1b
            pl.BlockSpec((e_dim, e_dim), lambda i, idx: (0, 0)),         # W1c
            pl.BlockSpec((f_dim, e_dim), lambda i, idx: (0, 0)),         # W1f
            pl.BlockSpec((1, e_dim), lambda i, idx: (0, 0)),             # b1
            pl.BlockSpec((1, e_dim), lambda i, idx: (0, 0)),             # W2 (row)
            pl.BlockSpec(memory_space=pltpu.MemorySpace.SMEM),           # b2 scalar
            pl.BlockSpec(memory_space=pl.ANY),                           # all_embeddings (HBM)
        ],
        out_specs=pl.BlockSpec((tile_w, n_ants + 1), lambda i, idx: (i, 0)),
        scratch_shapes=[
            pltpu.VMEM((rows, e_dim), jnp.float32),   # gathered antecedent rows
            pltpu.SemaphoreType.DMA((1,)),            # shared gather semaphore
        ],
    )

    return pl.pallas_call(
        _fine_scorer_kernel,
        out_shape=jax.ShapeDtypeStruct((n_words, n_ants + 1), jnp.float32),
        grid_spec=grid_spec,
        compiler_params=pltpu.CompilerParams(
            dimension_semantics=("parallel",),
            # Explicit VMEM budget (re-derive for v7x's 64 MiB when enlarging tiles).
            vmem_limit_bytes=64 * 1024 * 1024,
        ),
    )(idx_flat, embeddings, feat2d, scores,
      w1a, w1b, w1c, w1f, b1, w2, b2, all_embeddings)


def make_params(key, word_embedding_size, feat_size=60):
    """Deterministic synthetic parameters matching the nn.Module shapes.

    hidden Linear: weight [E, 3E+60], bias [E]  (stored split & transposed:
        W1a/W1b/W1c [E, E], W1f [60, E], b1 [1, E])
    out    Linear: weight [1, E], bias [1]      (stored: W2 [1, E], b2 [1])
    """
    e = word_embedding_size
    ks = jax.random.split(key, 7)
    scale1 = 1.0 / jnp.sqrt(3.0 * e + feat_size)
    scale2 = 1.0 / jnp.sqrt(float(e))
    w1a = jax.random.normal(ks[0], (e, e), jnp.float32) * scale1
    w1b = jax.random.normal(ks[1], (e, e), jnp.float32) * scale1
    w1c = jax.random.normal(ks[2], (e, e), jnp.float32) * scale1
    w1f = jax.random.normal(ks[3], (feat_size, e), jnp.float32) * scale1
    b1 = jax.random.normal(ks[4], (1, e), jnp.float32) * scale1
    w2 = jax.random.normal(ks[5], (1, e), jnp.float32) * scale2
    b2 = jax.random.normal(ks[6], (1,), jnp.float32) * scale2
    return (w1a, w1b, w1c, w1f, b1, w2, b2)


def _reference_forward(all_embeddings, embeddings, features, indices, scores, params):
    """Pure-JAX reference mirroring the PyTorch module exactly."""
    w1a, w1b, w1c, w1f, b1, w2, b2 = params
    n_words, e = embeddings.shape
    n_ants = features.shape[1]
    a = jnp.broadcast_to(embeddings[:, None, :], (n_words, n_ants, e))
    b = all_embeddings[indices]
    pair = jnp.concatenate([a, b, a * b, features], axis=2)
    w1 = jnp.concatenate([w1a, w1b, w1c, w1f], axis=0)        # [3E+60, E]
    h = pair @ w1 + b1[0]
    h = jnp.where(h > 0, h, 0.01 * h)
    s = (h @ w2[0]) + b2[0]
    s = scores + s
    dummy = jnp.full((n_words, 1), 1e-7, dtype=s.dtype)
    return jnp.concatenate([dummy, s], axis=1)


if __name__ == "__main__":
    E = 64            # word_embedding_size
    N_WORDS = 32
    N_ANTS = 8
    ALL_WORDS = 48
    FEAT = 3 * 20

    key = jax.random.PRNGKey(0)
    k_all, k_emb, k_feat, k_idx, k_sc, k_par = jax.random.split(key, 6)

    all_embeddings = jax.random.normal(k_all, (ALL_WORDS, E), jnp.float32)
    embeddings = jax.random.normal(k_emb, (N_WORDS, E), jnp.float32)
    features = jax.random.normal(k_feat, (N_WORDS, N_ANTS, FEAT), jnp.float32)
    indices = jax.random.randint(k_idx, (N_WORDS, N_ANTS), 0, ALL_WORDS, jnp.int32)
    scores = jax.random.normal(k_sc, (N_WORDS, N_ANTS), jnp.float32)
    params = make_params(k_par, E, FEAT)

    out = fine_scorer_forward(all_embeddings, embeddings, features, indices,
                              scores, params, tile_w=16)
    out = jax.block_until_ready(out)
    assert out.shape == (N_WORDS, N_ANTS + 1)

    ref = _reference_forward(all_embeddings, embeddings, features, indices,
                             scores, params)
    assert jnp.allclose(out, ref, atol=1e-4, rtol=1e-4), "mismatch vs reference"

    print("KERNEL_OK")
</pallas_src>

<mosaic_0001>
module attributes {stable_mosaic.version = 11 : i64} {
  func.func @_fine_scorer_kernel(%arg0: i32, %arg1: memref<256xi32, #tpu.memory_space<smem>>, %arg2: memref<16x64xf32, #tpu.memory_space<vmem>>, %arg3: memref<128x60xf32, #tpu.memory_space<vmem>>, %arg4: memref<16x8xf32, #tpu.memory_space<vmem>>, %arg5: memref<64x64xf32, #tpu.memory_space<vmem>>, %arg6: memref<64x64xf32, #tpu.memory_space<vmem>>, %arg7: memref<64x64xf32, #tpu.memory_space<vmem>>, %arg8: memref<60x64xf32, #tpu.memory_space<vmem>>, %arg9: memref<1x64xf32, #tpu.memory_space<vmem>>, %arg10: memref<1x64xf32, #tpu.memory_space<vmem>>, %arg11: memref<1xf32, #tpu.memory_space<smem>>, %arg12: memref<48x64xf32, #tpu.memory_space<any>>, %arg13: memref<16x9xf32, #tpu.memory_space<vmem>>, %arg14: memref<128x64xf32, #tpu.memory_space<vmem>>, %arg15: memref<1x!tpu.dma_semaphore, #tpu.memory_space<semaphore_mem>>) attributes {dimension_semantics = [#tpu.dimension_semantics<parallel>], iteration_bounds = array<i64: 2>, scalar_prefetch = 1 : i64, scratch_operands = 2 : i64, tpu.core_type = #tpu.core_type<tc>, window_params = [{transform_indices = @transform_0, window_bounds = array<i64: 16, 64>}, {transform_indices = @transform_1, window_bounds = array<i64: 128, 60>}, {transform_indices = @transform_2, window_bounds = array<i64: 16, 8>}, {pipeline_mode = #tpu.pipeline_mode<synchronous>, transform_indices = @transform_3, window_bounds = array<i64: 64, 64>}, {pipeline_mode = #tpu.pipeline_mode<synchronous>, transform_indices = @transform_4, window_bounds = array<i64: 64, 64>}, {pipeline_mode = #tpu.pipeline_mode<synchronous>, transform_indices = @transform_5, window_bounds = array<i64: 64, 64>}, {pipeline_mode = #tpu.pipeline_mode<synchronous>, transform_indices = @transform_6, window_bounds = array<i64: 60, 64>}, {pipeline_mode = #tpu.pipeline_mode<synchronous>, transform_indices = @transform_7, window_bounds = array<i64: 1, 64>}, {pipeline_mode = #tpu.pipeline_mode<synchronous>, transform_indices = @transform_8, window_bounds = array<i64: 1, 64>}, {transform_indices = @transform_9, window_bounds = array<i64: 1>}, {}, {transform_indices = @transform_11, window_bounds = array<i64: 16, 9>}]} {
    %c128_i32 = arith.constant 128 : i32
    %0 = arith.muli %arg0, %c128_i32 : i32
    %c0_i32 = arith.constant 0 : i32
    %c128_i32_0 = arith.constant 128 : i32
    %1 = arith.addi %c0_i32, %c128_i32_0 : i32
    %c1_i32 = arith.constant 1 : i32
    scf.for %arg16 = %c0_i32 to %1 step %c1_i32  : i32 {
      %46 = arith.addi %0, %arg16 : i32
      %47 = arith.index_cast %46 : i32 to index
      %48 = memref.load %arg1[%47] : memref<256xi32, #tpu.memory_space<smem>>
      %c0_i32_36 = arith.constant 0 : i32
      %c0_i32_37 = arith.constant 0 : i32
      %49 = tpu.memref_slice %arg12[%48, %c0_i32_37] : memref<48x64xf32, #tpu.memory_space<any>> -> memref<1x64xf32, #tpu.memory_space<any>>
      %50 = tpu.memref_squeeze %49 : memref<1x64xf32, #tpu.memory_space<any>> -> memref<64xf32, #tpu.memory_space<any>>
      %c0_i32_38 = arith.constant 0 : i32
      %51 = tpu.memref_slice %arg14[%arg16, %c0_i32_38] : memref<128x64xf32, #tpu.memory_space<vmem>> -> memref<1x64xf32, #tpu.memory_space<vmem>>
      %52 = tpu.memref_squeeze %51 : memref<1x64xf32, #tpu.memory_space<vmem>> -> memref<64xf32, #tpu.memory_space<vmem>>
      %53 = tpu.memref_slice %arg15[%c0_i32_36] : memref<1x!tpu.dma_semaphore, #tpu.memory_space<semaphore_mem>> -> memref<1x!tpu.dma_semaphore, #tpu.memory_space<semaphore_mem>>
      %54 = tpu.memref_squeeze %53 : memref<1x!tpu.dma_semaphore, #tpu.memory_space<semaphore_mem>> -> memref<!tpu.dma_semaphore, #tpu.memory_space<semaphore_mem>>
      tpu.enqueue_dma source(%50 : memref<64xf32, #tpu.memory_space<any>>) target(%52 : memref<64xf32, #tpu.memory_space<vmem>>) target_semaphore(%54 : memref<!tpu.dma_semaphore, #tpu.memory_space<semaphore_mem>>)
    }
    %c128_i32_1 = arith.constant 128 : i32
    %c0 = arith.constant 0 : index
    %c0_2 = arith.constant 0 : index
    %2 = vector.load %arg2[%c0, %c0_2] : memref<16x64xf32, #tpu.memory_space<vmem>>, vector<16x64xf32>
    %c0_3 = arith.constant 0 : index
    %c0_4 = arith.constant 0 : index
    %3 = vector.load %arg5[%c0_3, %c0_4] : memref<64x64xf32, #tpu.memory_space<vmem>>, vector<64x64xf32>
    %cst = arith.constant dense<0.000000e+00> : vector<16x64xf32>
    %4 = tpu.matmul %2, %3, %cst {dimension_numbers = #tpu.dot_dimension_numbers<[1], [0], [0], [1], [0, 0, 1, 1], [], []>} : vector<16x64xf32>, vector<64x64xf32>, vector<16x64xf32> -> vector<16x64xf32>
    %c0_5 = arith.constant 0 : index
    %c0_6 = arith.constant 0 : index
    %5 = vector.load %arg3[%c0_5, %c0_6] : memref<128x60xf32, #tpu.memory_space<vmem>>, vector<128x60xf32>
    %c0_7 = arith.constant 0 : index
    %c0_8 = arith.constant 0 : index
    %6 = vector.load %arg8[%c0_7, %c0_8] : memref<60x64xf32, #tpu.memory_space<vmem>>, vector<60x64xf32>
    %cst_9 = arith.constant dense<0.000000e+00> : vector<128x64xf32>
    %7 = tpu.matmul %5, %6, %cst_9 {dimension_numbers = #tpu.dot_dimension_numbers<[1], [0], [0], [1], [0, 0, 1, 1], [], []>} : vector<128x60xf32>, vector<60x64xf32>, vector<128x64xf32> -> vector<128x64xf32>
    %c0_i32_10 = arith.constant 0 : i32
    %c128_i32_11 = arith.constant 128 : i32
    %8 = arith.addi %c0_i32_10, %c128_i32_11 : i32
    %c1_i32_12 = arith.constant 1 : i32
    scf.for %arg16 = %c0_i32_10 to %8 step %c1_i32_12  : i32 {
      %c0_i32_36 = arith.constant 0 : i32
      %c0_i32_37 = arith.constant 0 : i32
      %c0_i32_38 = arith.constant 0 : i32
      %46 = tpu.memref_slice %arg12[%c0_i32_36, %c0_i32_38] : memref<48x64xf32, #tpu.memory_space<any>> -> memref<1x64xf32, #tpu.memory_space<any>>
      %47 = tpu.memref_squeeze %46 : memref<1x64xf32, #tpu.memory_space<any>> -> memref<64xf32, #tpu.memory_space<any>>
      %c0_i32_39 = arith.constant 0 : i32
      %48 = tpu.memref_slice %arg14[%arg16, %c0_i32_39] : memref<128x64xf32, #tpu.memory_space<vmem>> -> memref<1x64xf32, #tpu.memory_space<vmem>>
      %49 = tpu.memref_squeeze %48 : memref<1x64xf32, #tpu.memory_space<vmem>> -> memref<64xf32, #tpu.memory_space<vmem>>
      %50 = tpu.memref_slice %arg15[%c0_i32_37] : memref<1x!tpu.dma_semaphore, #tpu.memory_space<semaphore_mem>> -> memref<1x!tpu.dma_semaphore, #tpu.memory_space<semaphore_mem>>
      %51 = tpu.memref_squeeze %50 : memref<1x!tpu.dma_semaphore, #tpu.memory_space<semaphore_mem>> -> memref<!tpu.dma_semaphore, #tpu.memory_space<semaphore_mem>>
      tpu.wait_dma2 semaphore(%51 : memref<!tpu.dma_semaphore, #tpu.memory_space<semaphore_mem>>) src(%47 : memref<64xf32, #tpu.memory_space<any>>) dst(%49 : memref<64xf32, #tpu.memory_space<vmem>>)
    }
    %c128_i32_13 = arith.constant 128 : i32
    %c0_14 = arith.constant 0 : index
    %c0_15 = arith.constant 0 : index
    %9 = vector.load %arg14[%c0_14, %c0_15] : memref<128x64xf32, #tpu.memory_space<vmem>>, vector<128x64xf32>
    %10 = vector.shape_cast %2 : vector<16x64xf32> to vector<16x1x64xf32>
    %11 = vector.shape_cast %9 : vector<128x64xf32> to vector<16x8x64xf32>
    %12 = vector.broadcast %10 : vector<16x1x64xf32> to vector<16x8x64xf32>
    %13 = arith.mulf %12, %11 : vector<16x8x64xf32>
    %14 = vector.shape_cast %13 : vector<16x8x64xf32> to vector<128x64xf32>
    %c0_16 = arith.constant 0 : index
    %c0_17 = arith.constant 0 : index
    %15 = vector.load %arg6[%c0_16, %c0_17] : memref<64x64xf32, #tpu.memory_space<vmem>>, vector<64x64xf32>
    %cst_18 = arith.constant dense<0.000000e+00> : vector<128x64xf32>
    %16 = tpu.matmul %9, %15, %cst_18 {dimension_numbers = #tpu.dot_dimension_numbers<[1], [0], [0], [1], [0, 0, 1, 1], [], []>} : vector<128x64xf32>, vector<64x64xf32>, vector<128x64xf32> -> vector<128x64xf32>
    %c0_19 = arith.constant 0 : index
    %c0_20 = arith.constant 0 : index
    %17 = vector.load %arg7[%c0_19, %c0_20] : memref<64x64xf32, #tpu.memory_space<vmem>>, vector<64x64xf32>
    %cst_21 = arith.constant dense<0.000000e+00> : vector<128x64xf32>
    %18 = tpu.matmul %14, %17, %cst_21 {dimension_numbers = #tpu.dot_dimension_numbers<[1], [0], [0], [1], [0, 0, 1, 1], [], []>} : vector<128x64xf32>, vector<64x64xf32>, vector<128x64xf32> -> vector<128x64xf32>
    %19 = arith.addf %16, %18 : vector<128x64xf32>
    %20 = arith.addf %19, %7 : vector<128x64xf32>
    %c0_22 = arith.constant 0 : index
    %c0_23 = arith.constant 0 : index
    %21 = vector.load %arg9[%c0_22, %c0_23] : memref<1x64xf32, #tpu.memory_space<vmem>>, vector<1x64xf32>
    %22 = vector.broadcast %21 : vector<1x64xf32> to vector<128x64xf32>
    %23 = arith.addf %20, %22 : vector<128x64xf32>
    %24 = vector.shape_cast %23 : vector<128x64xf32> to vector<16x8x64xf32>
    %25 = vector.shape_cast %4 : vector<16x64xf32> to vector<16x1x64xf32>
    %26 = vector.broadcast %25 : vector<16x1x64xf32> to vector<16x8x64xf32>
    %27 = arith.addf %24, %26 : vector<16x8x64xf32>
    %cst_24 = arith.constant 0.000000e+00 : f32
    %28 = vector.broadcast %cst_24 : f32 to vector<16x8x64xf32>
    %29 = arith.cmpf ogt, %27, %28 : vector<16x8x64xf32>
    %cst_25 = arith.constant 0.00999999977 : f32
    %30 = vector.broadcast %cst_25 : f32 to vector<16x8x64xf32>
    %31 = arith.mulf %30, %27 : vector<16x8x64xf32>
    %32 = arith.select %29, %27, %31 : vector<16x8x64xi1>, vector<16x8x64xf32>
    %c0_26 = arith.constant 0 : index
    %c0_27 = arith.constant 0 : index
    %33 = vector.load %arg10[%c0_26, %c0_27] : memref<1x64xf32, #tpu.memory_space<vmem>>, vector<1x64xf32>
    %34 = vector.shape_cast %33 : vector<1x64xf32> to vector<1x1x64xf32>
    %35 = vector.broadcast %34 : vector<1x1x64xf32> to vector<16x8x64xf32>
    %36 = arith.mulf %32, %35 : vector<16x8x64xf32>
    %cst_28 = arith.constant dense<0.000000e+00> : vector<16x8xf32>
    %37 = vector.multi_reduction <add>, %36, %cst_28 [2] : vector<16x8x64xf32> to vector<16x8xf32>
    %c0_29 = arith.constant 0 : index
    %38 = memref.load %arg11[%c0_29] : memref<1xf32, #tpu.memory_space<smem>>
    %39 = vector.broadcast %38 : f32 to vector<16x8xf32>
    %40 = arith.addf %37, %39 : vector<16x8xf32>
    %c0_30 = arith.constant 0 : index
    %c0_31 = arith.constant 0 : index
    %41 = vector.load %arg4[%c0_30, %c0_31] : memref<16x8xf32, #tpu.memory_space<vmem>>, vector<16x8xf32>
    %42 = arith.addf %41, %40 : vector<16x8xf32>
    %c0_32 = arith.constant 0 : index
    %c1 = arith.constant 1 : index
    %43 = vector.load %arg13[%c0_32, %c1] : memref<16x9xf32, #tpu.memory_space<vmem>>, vector<16x8xf32>
    tpu.vector_store %arg13[%c0_32, %c1], %42 {strides = array<i32>} : memref<16x9xf32, #tpu.memory_space<vmem>>, vector<16x8xf32>,
    %cst_33 = arith.constant 1.000000e-07 : f32
    %44 = vector.broadcast %cst_33 : f32 to vector<16x1xf32>
    %c0_34 = arith.constant 0 : index
    %c0_35 = arith.constant 0 : index
    %45 = vector.load %arg13[%c0_34, %c0_35] : memref<16x9xf32, #tpu.memory_space<vmem>>, vector<16x1xf32>
    tpu.vector_store %arg13[%c0_34, %c0_35], %44 {strides = array<i32>} : memref<16x9xf32, #tpu.memory_space<vmem>>, vector<16x1xf32>,
    return
  }
  func.func @transform_0(%arg0: i32, %arg1: memref<256xi32, #tpu.memory_space<smem>>) -> (i32, i32) {
    %c0_i32 = arith.constant 0 : i32
    %c0_i32_0 = arith.constant 0 : i32
    return %arg0, %c0_i32 : i32, i32
  }
  func.func @transform_1(%arg0: i32, %arg1: memref<256xi32, #tpu.memory_space<smem>>) -> (i32, i32) {
    %c0_i32 = arith.constant 0 : i32
    %c0_i32_0 = arith.constant 0 : i32
    return %arg0, %c0_i32 : i32, i32
  }
  func.func @transform_2(%arg0: i32, %arg1: memref<256xi32, #tpu.memory_space<smem>>) -> (i32, i32) {
    %c0_i32 = arith.constant 0 : i32
    %c0_i32_0 = arith.constant 0 : i32
    return %arg0, %c0_i32 : i32, i32
  }
  func.func @transform_3(%arg0: i32, %arg1: memref<256xi32, #tpu.memory_space<smem>>) -> (i32, i32) {
    %c0_i32 = arith.constant 0 : i32
    %c0_i32_0 = arith.constant 0 : i32
    %c0_i32_1 = arith.constant 0 : i32
    return %c0_i32, %c0_i32_0 : i32, i32
  }
  func.func @transform_4(%arg0: i32, %arg1: memref<256xi32, #tpu.memory_space<smem>>) -> (i32, i32) {
    %c0_i32 = arith.constant 0 : i32
    %c0_i32_0 = arith.constant 0 : i32
    %c0_i32_1 = arith.constant 0 : i32
    return %c0_i32, %c0_i32_0 : i32, i32
  }
  func.func @transform_5(%arg0: i32, %arg1: memref<256xi32, #tpu.memory_space<smem>>) -> (i32, i32) {
    %c0_i32 = arith.constant 0 : i32
    %c0_i32_0 = arith.constant 0 : i32
    %c0_i32_1 = arith.constant 0 : i32
    return %c0_i32, %c0_i32_0 : i32, i32
  }
  func.func @transform_6(%arg0: i32, %arg1: memref<256xi32, #tpu.memory_space<smem>>) -> (i32, i32) {
    %c0_i32 = arith.constant 0 : i32
    %c0_i32_0 = arith.constant 0 : i32
    %c0_i32_1 = arith.constant 0 : i32
    return %c0_i32, %c0_i32_0 : i32, i32
  }
  func.func @transform_7(%arg0: i32, %arg1: memref<256xi32, #tpu.memory_space<smem>>) -> (i32, i32) {
    %c0_i32 = arith.constant 0 : i32
    %c0_i32_0 = arith.constant 0 : i32
    %c0_i32_1 = arith.constant 0 : i32
    return %c0_i32, %c0_i32_0 : i32, i32
  }
  func.func @transform_8(%arg0: i32, %arg1: memref<256xi32, #tpu.memory_space<smem>>) -> (i32, i32) {
    %c0_i32 = arith.constant 0 : i32
    %c0_i32_0 = arith.constant 0 : i32
    %c0_i32_1 = arith.constant 0 : i32
    return %c0_i32, %c0_i32_0 : i32, i32
  }
  func.func @transform_9(%arg0: i32, %arg1: memref<256xi32, #tpu.memory_space<smem>>) -> i32 {
    %c0_i32 = arith.constant 0 : i32
    %c0_i32_0 = arith.constant 0 : i32
    return %c0_i32 : i32
  }
  func.func @transform_11(%arg0: i32, %arg1: memref<256xi32, #tpu.memory_space<smem>>) -> (i32, i32) {
    %c0_i32 = arith.constant 0 : i32
    %c0_i32_0 = arith.constant 0 : i32
    return %arg0, %c0_i32 : i32, i32
  }
}

</mosaic_0001>

<llo_original>
// kernel: fine_scorer_forward.1
$region0: #{fine_scorer_forward.1}
  #allocation0 [shape = 'u32[]', space=smem, size = 0x4, offset = 0x4, fixed_abs, tag = 'smem constant byte address 0x4 - core index']
  #allocation1 [shape = 'u32[144,128]{1,0:T(1,128)}', space=vmem, size = 0x12000, scoped, tag = 'internal scratch']
  #allocation2 [shape = 'f32[128,64]{1,0:T(8,128)}', space=vmem, size = 0x10000, scoped, tag = 'scratch operand']
  #allocation3 [shape = 's32[1]{0}', space=sflag, size = 0x4, scoped, tag = 'scratch operand']
  #allocation4 [shape = 's32[1]{0}', space=sflag, size = 0x4, scoped, tag = 'scoped memory for fine_scorer_forward.1']
  #allocation5 [shape = 'u8[1024]{0}', space=smem, size = 0x400, scoped, tag = 'prefetched SMEM operand 0']
  #allocation6 [shape = 'f32[1]{0:T(128)S(6)}', space=smem, size = 0x200, scoped, tag = 'scoped memory for fine_scorer_forward.1']
  #allocation23 [shape = 's32[]', space=sflag, size = 0x4, offset = 0, fixed_abs, tag = 'sflag constant byte address 0x0 - dummy sync flag']
  #allocation24 [shape = 's32[]', space=sflag, size = 0x4, offset = 0, fixed_abs, tag = 'sflag constant byte address 0x0 - dummy sync flag']
  #allocation25 [shape = 'u32[]', space=smem, size = 0x4, offset = 0x44, fixed_abs, tag = 'smem constant byte address 0x44 - assertion arg 0']
  #allocation26 [shape = 'u32[]', space=smem, size = 0x4, offset = 0x48, fixed_abs, tag = 'smem constant byte address 0x48 - assertion arg 1']
  %s0 = inlined_call_operand.hbm [shape: s32[256], index: 0, kind: input, shape index: {}]
  %s1 = inlined_call_operand.hbm [shape: f32[32,64], index: 1, kind: input, shape index: {}]
  %s2 = inlined_call_operand.hbm [shape: f32[256,60], index: 2, kind: input, shape index: {}]
  %s3 = inlined_call_operand.hbm [shape: f32[32,8], index: 3, kind: input, shape index: {}]
  %s4 = inlined_call_operand.hbm [shape: f32[64,64], index: 4, kind: input, shape index: {}]
  %s5 = inlined_call_operand.hbm [shape: f32[64,64], index: 5, kind: input, shape index: {}]
  %s6 = inlined_call_operand.hbm [shape: f32[64,64], index: 6, kind: input, shape index: {}]
  %s7 = inlined_call_operand.hbm [shape: f32[60,64], index: 7, kind: input, shape index: {}]
  %s8 = inlined_call_operand.hbm [shape: f32[1,64], index: 8, kind: input, shape index: {}]
  %s9 = inlined_call_operand.hbm [shape: f32[1,64], index: 9, kind: input, shape index: {}]
  %s10 = inlined_call_operand.<no memory space> [shape: f32[1], index: 10, kind: input, shape index: {}]
  %s11 = inlined_call_operand.hbm [shape: f32[48,64], index: 11, kind: input, shape index: {}]
  %s12 = inlined_call_operand.hbm [shape: f32[32,9], index: 12, kind: output, shape index: {}]
  %s13 = sld [smem:[#allocation0]]
  $region127: #{fine_scorer_forward.1} parent=0
    _
  %s15 = ssub.s32 1, %s13
  %s16 = scalar_select 0, %s15, %s13
  %18 = dma.hbm_to_smem %s0, 32, [#allocation5], [#allocation4]
  %19 = sst [smem:[#allocation6]] %s10
  %20 = dma.done [#allocation4], 32
  %21 = sfence
  $region1: #{fine_scorer_forward.1} parent=0
    #allocation7 [shape = 'u8[16384]{0}', space=vmem, size = 0x4000, scoped, tag = 'input window, operand 1']
    #allocation8 [shape = 's32[2]{0}', space=sflag, size = 0x8, scoped, tag = 'scoped memory for fine_scorer_forward.1']
    #allocation9 [shape = 's32[2]{0}', space=sflag, size = 0x8, scoped, tag = 'scoped memory for fine_scorer_forward.1']
    #allocation10 [shape = 'u8[131072]{0}', space=vmem, size = 0x20000, scoped, tag = 'input window, operand 2']
    #allocation11 [shape = 's32[2]{0}', space=sflag, size = 0x8, scoped, tag = 'scoped memory for fine_scorer_forward.1']
    #allocation12 [shape = 'u8[16384]{0}', space=vmem, size = 0x4000, scoped, tag = 'input window, operand 3']
    #allocation13 [shape = 'u8[32768]{0}', space=vmem, size = 0x8000, scoped, tag = 'input window, operand 4, single buffered']
    #allocation14 [shape = 's32[1]{0}', space=sflag, size = 0x4, scoped, tag = 'scoped memory for fine_scorer_forward.1']
    #allocation15 [shape = 'u8[32768]{0}', space=vmem, size = 0x8000, scoped, tag = 'input window, operand 5, single buffered']
    #allocation16 [shape = 'u8[32768]{0}', space=vmem, size = 0x8000, scoped, tag = 'input window, operand 6, single buffered']
    #allocation17 [shape = 's32[1]{0}', space=sflag, size = 0x4, scoped, tag = 'scoped memory for fine_scorer_forward.1']
    #allocation18 [shape = 'u8[32768]{0}', space=vmem, size = 0x8000, scoped, tag = 'input window, operand 7, single buffered']
    #allocation19 [shape = 'u8[512]{0}', space=vmem, size = 0x400, scoped, tag = 'input window, operand 8, single buffered']
    #allocation20 [shape = 's32[1]{0}', space=sflag, size = 0x4, scoped, tag = 'scoped memory for fine_scorer_forward.1']
    #allocation21 [shape = 'u8[512]{0}', space=vmem, size = 0x400, scoped, tag = 'input window, operand 9, single buffered']
    #allocation22 [shape = 'u8[16384]{0}', space=vmem, size = 0x4000, scoped, tag = 'output window, operand 0']
    %22 = vsyncpa [#allocation8], 0
    %s23 = scalar_lea.sflag [#allocation8], 1
    %24 = vsyncpa %s23, 0
    %25 = vsyncpa [#allocation11], 0
    %s26 = scalar_lea.sflag [#allocation11], 1
    %27 = vsyncpa %s26, 0
    %28 = vsyncpa [#allocation14], 0
    %29 = vsyncpa [#allocation17], 0
    %30 = vsyncpa [#allocation20], 0
    %31 = vsyncpa [#allocation9], 0
    %s32 = scalar_lea.sflag [#allocation9], 1
    %33 = vsyncpa %s32, 0
    loop: start=0, step=1, limit=4
    $region2: #{fine_scorer_forward.1} parent=1 // loop_pre_header
      _
    $region3: #{fine_scorer_forward.1} parent=1 // loop_header
      %s35 = sphi 0, %s39
      %p36 = scmp.ge.s32.totalorder %s35, 4
      %s45 = sphi 0, %s47
      %s48 = sphi 0, %s45
      %s49 = sphi 0, %s48
      %s65 = sphi 0, %s49
      %s71 = sphi 0, %s73
      %s74 = sphi 0, %s71
      %s75 = sphi 0, %s74
      %s91 = sphi 0, %s75
      %s97 = sphi 0, %s99
      %s100 = sphi 0, %s97
      %s101 = sphi 0, %s100
      %s117 = sphi 0, %s101
      %s121 = sphi 0, %s121
      %s123 = sphi 0, %s121
      %s124 = sphi 0, %s123
      %s138 = sphi 0, %s124
      %s142 = sphi 0, %s142
      %s144 = sphi 0, %s142
      %s145 = sphi 0, %s144
      %s159 = sphi 0, %s145
      %s163 = sphi 0, %s163
      %s165 = sphi 0, %s163
      %s166 = sphi 0, %s165
      %s180 = sphi 0, %s166
      %s184 = sphi 0, %s184
      %s186 = sphi 0, %s184
      %s187 = sphi 0, %s186
      %s201 = sphi 0, %s187
      %s205 = sphi 0, %s205
      %s207 = sphi 0, %s205
      %s208 = sphi 0, %s207
      %s222 = sphi 0, %s208
      %s226 = sphi 0, %s226
      %s228 = sphi 0, %s226
      %s229 = sphi 0, %s228
      %s243 = sphi 0, %s229
      %s247 = sphi 0, %s247
      %s249 = sphi 0, %s247
      %s250 = sphi 0, %s249
      %s264 = sphi 0, %s250
      %s270 = sphi 0, %s272
      %s273 = sphi 0, %s270
      %s274 = sphi 0, %s273
      %s290 = sphi 0, %s274
    $region4: #{fine_scorer_forward.1} parent=1 // loop_header_branch
      %38 = sbr.rel (%p36) target = $region8
    $region5: #{fine_scorer_forward.1} parent=1 // loop_body
      %s40 = ssub.s32 %s35, 1
      %s41 = ssub.s32 %s35, 2
      %s42 = sadd.s32 %s35, 1
      %s43 = ssub.s32 %s35, %s42
      %p44 = scmp.eq.s32.totalorder %s43, 0
      %s46 = sadd.s32 %s45, 1
      %s47 = scalar_select %p44, %s45, %s46
      %p50 = pneg %p44
      %p51 = scmp.eq.s32.totalorder %s35, 1
      %p52 = por %p50, %p51
      %p53 = scmp.ne.s32.totalorder %s45, %s48
      %p54 = scmp.eq.s32.totalorder %s35, 0
      %p55 = por %p53, %p54
      %p56 = scmp.ne.s32.totalorder %s45, %s48
      %p57 = scmp.eq.s32.totalorder %s40, 1
      %p58 = por %p56, %p57
      %p59 = scmp.ne.s32.totalorder %s48, %s49
      %p60 = scmp.eq.s32.totalorder %s40, 0
      %p61 = por %p59, %p60
      %p62 = scmp.ne.s32.totalorder %s48, %s49
      %p63 = scmp.eq.s32.totalorder %s41, 1
      %p64 = por %p62, %p63
      %p66 = scmp.ne.s32.totalorder %s49, %s65
      %p67 = scmp.eq.s32.totalorder %s41, 0
      %p68 = por %p66, %p67
      %s69 = ssub.s32 %s35, %s42
      %p70 = scmp.eq.s32.totalorder %s69, 0
      %s72 = sadd.s32 %s71, 1
      %s73 = scalar_select %p70, %s71, %s72
      %p76 = pneg %p70
      %p77 = scmp.eq.s32.totalorder %s35, 1
      %p78 = por %p76, %p77
      %p79 = scmp.ne.s32.totalorder %s71, %s74
      %p80 = scmp.eq.s32.totalorder %s35, 0
      %p81 = por %p79, %p80
      %p82 = scmp.ne.s32.totalorder %s71, %s74
      %p83 = scmp.eq.s32.totalorder %s40, 1
      %p84 = por %p82, %p83
      %p85 = scmp.ne.s32.totalorder %s74, %s75
      %p86 = scmp.eq.s32.totalorder %s40, 0
      %p87 = por %p85, %p86
      %p88 = scmp.ne.s32.totalorder %s74, %s75
      %p89 = scmp.eq.s32.totalorder %s41, 1
      %p90 = por %p88, %p89
      %p92 = scmp.ne.s32.totalorder %s75, %s91
      %p93 = scmp.eq.s32.totalorder %s41, 0
      %p94 = por %p92, %p93
      %s95 = ssub.s32 %s35, %s42
      %p96 = scmp.eq.s32.totalorder %s95, 0
      %s98 = sadd.s32 %s97, 1
      %s99 = scalar_select %p96, %s97, %s98
      %p102 = pneg %p96
      %p103 = scmp.eq.s32.totalorder %s35, 1
      %p104 = por %p102, %p103
      %p105 = scmp.ne.s32.totalorder %s97, %s100
      %p106 = scmp.eq.s32.totalorder %s35, 0
      %p107 = por %p105, %p106
      %p108 = scmp.ne.s32.totalorder %s97, %s100
      %p109 = scmp.eq.s32.totalorder %s40, 1
      %p110 = por %p108, %p109
      %p111 = scmp.ne.s32.totalorder %s100, %s101
      %p112 = scmp.eq.s32.totalorder %s40, 0
      %p113 = por %p111, %p112
      %p114 = scmp.ne.s32.totalorder %s100, %s101
      %p115 = scmp.eq.s32.totalorder %s41, 1
      %p116 = por %p114, %p115
      %p118 = scmp.ne.s32.totalorder %s101, %s117
      %p119 = scmp.eq.s32.totalorder %s41, 0
      %p120 = por %p118, %p119
      %s122 = sadd.s32 %s121, 1
      %p125 = scmp.eq.s32.totalorder %s35, 1
      %p126 = scmp.ne.s32.totalorder %s121, %s123
      %p127 = scmp.eq.s32.totalorder %s35, 0
      %p128 = por %p126, %p127
      %p129 = scmp.ne.s32.totalorder %s121, %s123
      %p130 = scmp.eq.s32.totalorder %s40, 1
      %p131 = por %p129, %p130
      %p132 = scmp.ne.s32.totalorder %s123, %s124
      %p133 = scmp.eq.s32.totalorder %s40, 0
      %p134 = por %p132, %p133
      %p135 = scmp.ne.s32.totalorder %s123, %s124
      %p136 = scmp.eq.s32.totalorder %s41, 1
      %p137 = por %p135, %p136
      %p139 = scmp.ne.s32.totalorder %s124, %s138
      %p140 = scmp.eq.s32.totalorder %s41, 0
      %p141 = por %p139, %p140
      %s143 = sadd.s32 %s142, 1
      %p146 = scmp.eq.s32.totalorder %s35, 1
      %p147 = scmp.ne.s32.totalorder %s142, %s144
      %p148 = scmp.eq.s32.totalorder %s35, 0
      %p149 = por %p147, %p148
      %p150 = scmp.ne.s32.totalorder %s142, %s144
      %p151 = scmp.eq.s32.totalorder %s40, 1
      %p152 = por %p150, %p151
      %p153 = scmp.ne.s32.totalorder %s144, %s145
      %p154 = scmp.eq.s32.totalorder %s40, 0
      %p155 = por %p153, %p154
      %p156 = scmp.ne.s32.totalorder %s144, %s145
      %p157 = scmp.eq.s32.totalorder %s41, 1
      %p158 = por %p156, %p157
      %p160 = scmp.ne.s32.totalorder %s145, %s159
      %p161 = scmp.eq.s32.totalorder %s41, 0
      %p162 = por %p160, %p161
      %s164 = sadd.s32 %s163, 1
      %p167 = scmp.eq.s32.totalorder %s35, 1
      %p168 = scmp.ne.s32.totalorder %s163, %s165
      %p169 = scmp.eq.s32.totalorder %s35, 0
      %p170 = por %p168, %p169
      %p171 = scmp.ne.s32.totalorder %s163, %s165
      %p172 = scmp.eq.s32.totalorder %s40, 1
      %p173 = por %p171, %p172
      %p174 = scmp.ne.s32.totalorder %s165, %s166
      %p175 = scmp.eq.s32.totalorder %s40, 0
      %p176 = por %p174, %p175
      %p177 = scmp.ne.s32.totalorder %s165, %s166
      %p178 = scmp.eq.s32.totalorder %s41, 1
      %p179 = por %p177, %p178
      %p181 = scmp.ne.s32.totalorder %s166, %s180
      %p182 = scmp.eq.s32.totalorder %s41, 0
      %p183 = por %p181, %p182
      %s185 = sadd.s32 %s184, 1
      %p188 = scmp.eq.s32.totalorder %s35, 1
      %p189 = scmp.ne.s32.totalorder %s184, %s186
      %p190 = scmp.eq.s32.totalorder %s35, 0
      %p191 = por %p189, %p190
      %p192 = scmp.ne.s32.totalorder %s184, %s186
      %p193 = scmp.eq.s32.totalorder %s40, 1
      %p194 = por %p192, %p193
      %p195 = scmp.ne.s32.totalorder %s186, %s187
      %p196 = scmp.eq.s32.totalorder %s40, 0
      %p197 = por %p195, %p196
      %p198 = scmp.ne.s32.totalorder %s186, %s187
      %p199 = scmp.eq.s32.totalorder %s41, 1
      %p200 = por %p198, %p199
      %p202 = scmp.ne.s32.totalorder %s187, %s201
      %p203 = scmp.eq.s32.totalorder %s41, 0
      %p204 = por %p202, %p203
      %s206 = sadd.s32 %s205, 1
      %p209 = scmp.eq.s32.totalorder %s35, 1
      %p210 = scmp.ne.s32.totalorder %s205, %s207
      %p211 = scmp.eq.s32.totalorder %s35, 0
      %p212 = por %p210, %p211
      %p213 = scmp.ne.s32.totalorder %s205, %s207
      %p214 = scmp.eq.s32.totalorder %s40, 1
      %p215 = por %p213, %p214
      %p216 = scmp.ne.s32.totalorder %s207, %s208
      %p217 = scmp.eq.s32.totalorder %s40, 0
      %p218 = por %p216, %p217
      %p219 = scmp.ne.s32.totalorder %s207, %s208
      %p220 = scmp.eq.s32.totalorder %s41, 1
      %p221 = por %p219, %p220
      %p223 = scmp.ne.s32.totalorder %s208, %s222
      %p224 = scmp.eq.s32.totalorder %s41, 0
      %p225 = por %p223, %p224
      %s227 = sadd.s32 %s226, 1
      %p230 = scmp.eq.s32.totalorder %s35, 1
      %p231 = scmp.ne.s32.totalorder %s226, %s228
      %p232 = scmp.eq.s32.totalorder %s35, 0
      %p233 = por %p231, %p232
      %p234 = scmp.ne.s32.totalorder %s226, %s228
      %p235 = scmp.eq.s32.totalorder %s40, 1
      %p236 = por %p234, %p235
      %p237 = scmp.ne.s32.totalorder %s228, %s229
      %p238 = scmp.eq.s32.totalorder %s40, 0
      %p239 = por %p237, %p238
      %p240 = scmp.ne.s32.totalorder %s228, %s229
      %p241 = scmp.eq.s32.totalorder %s41, 1
      %p242 = por %p240, %p241
      %p244 = scmp.ne.s32.totalorder %s229, %s243
      %p245 = scmp.eq.s32.totalorder %s41, 0
      %p246 = por %p244, %p245
      %s248 = sadd.s32 %s247, 1
      %p251 = scmp.eq.s32.totalorder %s35, 1
      %p252 = scmp.ne.s32.totalorder %s247, %s249
      %p253 = scmp.eq.s32.totalorder %s35, 0
      %p254 = por %p252, %p253
      %p255 = scmp.ne.s32.totalorder %s247, %s249
      %p256 = scmp.eq.s32.totalorder %s40, 1
      %p257 = por %p255, %p256
      %p258 = scmp.ne.s32.totalorder %s249, %s250
      %p259 = scmp.eq.s32.totalorder %s40, 0
      %p260 = por %p258, %p259
      %p261 = scmp.ne.s32.totalorder %s249, %s250
      %p262 = scmp.eq.s32.totalorder %s41, 1
      %p263 = por %p261, %p262
      %p265 = scmp.ne.s32.totalorder %s250, %s264
      %p266 = scmp.eq.s32.totalorder %s41, 0
      %p267 = por %p265, %p266
      %s268 = ssub.s32 %s35, %s42
      %p269 = scmp.eq.s32.totalorder %s268, 0
      %s271 = sadd.s32 %s270, 1
      %s272 = scalar_select %p269, %s270, %s271
      %p275 = pneg %p269
      %p276 = scmp.eq.s32.totalorder %s35, 1
      %p277 = por %p275, %p276
      %p278 = scmp.ne.s32.totalorder %s270, %s273
      %p279 = scmp.eq.s32.totalorder %s35, 0
      %p280 = por %p278, %p279
      %p281 = scmp.ne.s32.totalorder %s270, %s273
      %p282 = scmp.eq.s32.totalorder %s40, 1
      %p283 = por %p281, %p282
      %p284 = scmp.ne.s32.totalorder %s273, %s274
      %p285 = scmp.eq.s32.totalorder %s40, 0
      %p286 = por %p284, %p285
      %p287 = scmp.ne.s32.totalorder %s273, %s274
      %p288 = scmp.eq.s32.totalorder %s41, 1
      %p289 = por %p287, %p288
      %p291 = scmp.ne.s32.totalorder %s274, %s290
      %p292 = scmp.eq.s32.totalorder %s41, 0
      %p293 = por %p291, %p292
      %p294 = scmp.le.s32.totalorder 1, %s35
      %p295 = scmp.lt.s32.totalorder %s35, 3
      %p296 = pnand %p294, %p295
      %p297 = pneg %p296
      // Predicated region
      $region9: #{fine_scorer_forward.1} parent=5 // pred_check
        _
      $region10: #{fine_scorer_forward.1} parent=5 // pred_check_branch
        %299 = sbr.rel (%p296) target = $region12
      $region11: #{fine_scorer_forward.1} parent=5 // pred_region
        %s300 = ssub.s32 %s35, 1
        // Predicated region
        $region13: #{fine_scorer_forward.1} parent=11 // pred_check
          %p301 = pneg %p134
        $region14: #{fine_scorer_forward.1} parent=11 // pred_check_branch
          %303 = sbr.rel (%p301) target = $region16
        $region15: #{fine_scorer_forward.1} parent=11 // pred_region
          %s305 = ssub.s32 1024, 1024
          %306 = vsyncadd [#allocation14], %s305
          %s307 = sshll.u32 [#allocation13], 4
          %s308 = int_to_ptr.vmem [resolvable:$true] %s307
          %313 = dma.hbm_to_vmem [thread:$0]  %s4, 1024, %s308, [#allocation14], 128, 128, 8
        $region16: #{fine_scorer_forward.1} parent=11 // pred_fallthru
          _
        // Predicated region
        $region17: #{fine_scorer_forward.1} parent=11 // pred_check
          %p314 = pneg %p155
        $region18: #{fine_scorer_forward.1} parent=11 // pred_check_branch
          %316 = sbr.rel (%p314) target = $region20
        $region19: #{fine_scorer_forward.1} parent=11 // pred_region
          %s318 = ssub.s32 1024, 1024
          %319 = vsyncadd [#allocation14], %s318
          %s320 = sshll.u32 [#allocation15], 4
          %s321 = int_to_ptr.vmem [resolvable:$true] %s320
          %326 = dma.hbm_to_vmem [thread:$0]  %s5, 1024, %s321, [#allocation14], 128, 128, 8
        $region20: #{fine_scorer_forward.1} parent=11 // pred_fallthru
          _
        // Predicated region
        $region21: #{fine_scorer_forward.1} parent=11 // pred_check
          %p327 = pneg %p176
        $region22: #{fine_scorer_forward.1} parent=11 // pred_check_branch
          %329 = sbr.rel (%p327) target = $region24
        $region23: #{fine_scorer_forward.1} parent=11 // pred_region
          %s331 = ssub.s32 1024, 1024
          %332 = vsyncadd [#allocation17], %s331
          %s333 = sshll.u32 [#allocation16], 4
          %s334 = int_to_ptr.vmem [resolvable:$true] %s333
          %339 = dma.hbm_to_vmem [thread:$0]  %s6, 1024, %s334, [#allocation17], 128, 128, 8
        $region24: #{fine_scorer_forward.1} parent=11 // pred_fallthru
          _
        // Predicated region
        $region25: #{fine_scorer_forward.1} parent=11 // pred_check
          %p340 = pneg %p197
        $region26: #{fine_scorer_forward.1} parent=11 // pred_check_branch
          %342 = sbr.rel (%p340) target = $region28
        $region27: #{fine_scorer_forward.1} parent=11 // pred_region
          %s344 = ssub.s32 1024, 1024
          %345 = vsyncadd [#allocation17], %s344
          %s346 = sshll.u32 [#allocation18], 4
          %s347 = int_to_ptr.vmem [resolvable:$true] %s346
          %352 = dma.hbm_to_vmem [thread:$0]  %s7, 1024, %s347, [#allocation17], 128, 128, 8
        $region28: #{fine_scorer_forward.1} parent=11 // pred_fallthru
          _
        // Predicated region
        $region29: #{fine_scorer_forward.1} parent=11 // pred_check
          %p353 = pneg %p218
        $region30: #{fine_scorer_forward.1} parent=11 // pred_check_branch
          %355 = sbr.rel (%p353) target = $region32
        $region31: #{fine_scorer_forward.1} parent=11 // pred_region
          %s357 = ssub.s32 16, 16
          %358 = vsyncadd [#allocation20], %s357
          %s360 = sshll.u32 [#allocation19], 4
          %s361 = int_to_ptr.vmem [resolvable:$true] %s360
          %363 = dma.hbm_to_vmem [thread:$0]  %s8, 16, %s361, [#allocation20]
        $region32: #{fine_scorer_forward.1} parent=11 // pred_fallthru
          _
        // Predicated region
        $region33: #{fine_scorer_forward.1} parent=11 // pred_check
          %p364 = pneg %p239
        $region34: #{fine_scorer_forward.1} parent=11 // pred_check_branch
          %366 = sbr.rel (%p364) target = $region36
        $region35: #{fine_scorer_forward.1} parent=11 // pred_region
          %s368 = ssub.s32 16, 16
          %369 = vsyncadd [#allocation20], %s368
          %s371 = sshll.u32 [#allocation21], 4
          %s372 = int_to_ptr.vmem [resolvable:$true] %s371
          %374 = dma.hbm_to_vmem [thread:$0]  %s9, 16, %s372, [#allocation20]
        $region36: #{fine_scorer_forward.1} parent=11 // pred_fallthru
          _
        // Predicated region
        $region37: #{fine_scorer_forward.1} parent=11 // pred_check
          %p375 = pneg %p260
        $region38: #{fine_scorer_forward.1} parent=11 // pred_check_branch
          %377 = sbr.rel (%p375) target = $region40
        $region39: #{fine_scorer_forward.1} parent=11 // pred_region
          _
        $region40: #{fine_scorer_forward.1} parent=11 // pred_fallthru
          _
      $region12: #{fine_scorer_forward.1} parent=5 // pred_fallthru
        _
      %p378 = scmp.lt.s32.totalorder %s35, 2
      // Predicated region
      $region41: #{fine_scorer_forward.1} parent=5 // pred_check
        %p379 = pneg %p378
      $region42: #{fine_scorer_forward.1} parent=5 // pred_check_branch
        %381 = sbr.rel (%p379) target = $region44
      $region43: #{fine_scorer_forward.1} parent=5 // pred_region
        // Predicated region
        $region45: #{fine_scorer_forward.1} parent=43 // pred_check
          %p382 = pneg %p55
        $region46: #{fine_scorer_forward.1} parent=43 // pred_check_branch
          %384 = sbr.rel (%p382) target = $region48
        $region47: #{fine_scorer_forward.1} parent=43 // pred_region
          %s385 = sand.u32 %s45, 1
          %s386 = scalar_lea.sflag [#allocation8], %s385
          %s387 = sand.u32 %s45, 1
          %s388 = smul.addr %s387, 16
          %s389 = scalar_lea.vmem [#allocation7], %s388
          %s390 = smul.u32 2, %s35
          %s392 = ssub.s32 256, 256
          %393 = vsyncadd %s386, %s392
          %s394 = smul.addr %s390, 128
          %s395 = scalar_lea.hbm %s1, %s394
          %s396 = sshll.u32 %s389, 4
          %s397 = int_to_ptr.vmem [resolvable:$true] %s396
          %402 = dma.hbm_to_vmem [thread:$0]  %s395, 256, %s397, %s386, 128, 128, 8
        $region48: #{fine_scorer_forward.1} parent=43 // pred_fallthru
          _
        // Predicated region
        $region49: #{fine_scorer_forward.1} parent=43 // pred_check
          %p403 = pneg %p81
        $region50: #{fine_scorer_forward.1} parent=43 // pred_check_branch
          %405 = sbr.rel (%p403) target = $region52
        $region51: #{fine_scorer_forward.1} parent=43 // pred_region
          %s406 = sand.u32 %s35, 1
          %s407 = scalar_lea.sflag [#allocation11], %s406
          %s408 = sand.u32 %s71, 1
          %s409 = smul.addr %s408, 128
          %s410 = scalar_lea.vmem [#allocation10], %s409
          %s411 = smul.u32 16, %s35
          %s413 = ssub.s32 2048, 2048
          %414 = vsyncadd %s407, %s413
          %s415 = smul.addr %s411, 128
          %s416 = scalar_lea.hbm %s2, %s415
          %s417 = sshll.u32 %s410, 4
          %s418 = int_to_ptr.vmem [resolvable:$true] %s417
          %423 = dma.hbm_to_vmem [thread:$0]  %s416, 2048, %s418, %s407, 128, 128, 8
        $region52: #{fine_scorer_forward.1} parent=43 // pred_fallthru
          _
        // Predicated region
        $region53: #{fine_scorer_forward.1} parent=43 // pred_check
          %p424 = pneg %p107
        $region54: #{fine_scorer_forward.1} parent=43 // pred_check_branch
          %426 = sbr.rel (%p424) target = $region56
        $region55: #{fine_scorer_forward.1} parent=43 // pred_region
          %s427 = sand.u32 %s35, 1
          %s428 = scalar_lea.sflag [#allocation11], %s427
          %s429 = sand.u32 %s97, 1
          %s430 = smul.addr %s429, 16
          %s431 = scalar_lea.vmem [#allocation12], %s430
          %s432 = smul.u32 2, %s35
          %s434 = ssub.s32 256, 256
          %435 = vsyncadd %s428, %s434
          %s436 = smul.addr %s432, 128
          %s437 = scalar_lea.hbm %s3, %s436
          %s438 = sshll.u32 %s431, 4
          %s439 = int_to_ptr.vmem [resolvable:$true] %s438
          %444 = dma.hbm_to_vmem [thread:$0]  %s437, 256, %s439, %s428, 128, 128, 8
        $region56: #{fine_scorer_forward.1} parent=43 // pred_fallthru
          _
      $region44: #{fine_scorer_forward.1} parent=5 // pred_fallthru
        _
      %p445 = scmp.le.s32.totalorder 1, %s35
      %p446 = scmp.lt.s32.totalorder %s35, 3
      %p447 = pnand %p445, %p446
      %p448 = pneg %p447
      // Predicated region
      $region57: #{fine_scorer_forward.1} parent=5 // pred_check
        _
      $region58: #{fine_scorer_forward.1} parent=5 // pred_check_branch
        %450 = sbr.rel (%p447) target = $region60
      $region59: #{fine_scorer_forward.1} parent=5 // pred_region
        %s451 = ssub.s32 %s35, 1
        %s452 = sand.u32 %s48, 1
        %s453 = scalar_lea.sflag [#allocation8], %s452
        %s454 = sand.u32 %s48, 1
        %s455 = smul.addr %s454, 16
        %s456 = scalar_lea.vmem [#allocation7], %s455
        // Predicated region
        $region61: #{fine_scorer_forward.1} parent=59 // pred_check
          %p457 = pneg %p61
        $region62: #{fine_scorer_forward.1} parent=59 // pred_check_branch
          %459 = sbr.rel (%p457) target = $region64
        $region63: #{fine_scorer_forward.1} parent=59 // pred_region
          %460 = dma.done %s453, 256
        $region64: #{fine_scorer_forward.1} parent=59 // pred_fallthru
          _
        %s461 = sand.u32 %s40, 1
        %s462 = scalar_lea.sflag [#allocation11], %s461
        %s463 = sand.u32 %s74, 1
        %s464 = smul.addr %s463, 128
        %s465 = scalar_lea.vmem [#allocation10], %s464
        // Predicated region
        $region65: #{fine_scorer_forward.1} parent=59 // pred_check
          %p466 = pneg %p87
        $region66: #{fine_scorer_forward.1} parent=59 // pred_check_branch
          %468 = sbr.rel (%p466) target = $region68
        $region67: #{fine_scorer_forward.1} parent=59 // pred_region
          %469 = dma.done %s462, 2048
        $region68: #{fine_scorer_forward.1} parent=59 // pred_fallthru
          _
        %s470 = sand.u32 %s40, 1
        %s471 = scalar_lea.sflag [#allocation11], %s470
        %s472 = sand.u32 %s100, 1
        %s473 = smul.addr %s472, 16
        %s474 = scalar_lea.vmem [#allocation12], %s473
        // Predicated region
        $region69: #{fine_scorer_forward.1} parent=59 // pred_check
          %p475 = pneg %p113
        $region70: #{fine_scorer_forward.1} parent=59 // pred_check_branch
          %477 = sbr.rel (%p475) target = $region72
        $region71: #{fine_scorer_forward.1} parent=59 // pred_region
          %478 = dma.done %s471, 256
        $region72: #{fine_scorer_forward.1} parent=59 // pred_fallthru
          _
        // Predicated region
        $region73: #{fine_scorer_forward.1} parent=59 // pred_check
          %p479 = pneg %p134
        $region74: #{fine_scorer_forward.1} parent=59 // pred_check_branch
          %481 = sbr.rel (%p479) target = $region76
        $region75: #{fine_scorer_forward.1} parent=59 // pred_region
          %482 = dma.done [#allocation14], 1024
        $region76: #{fine_scorer_forward.1} parent=59 // pred_fallthru
          _
        // Predicated region
        $region77: #{fine_scorer_forward.1} parent=59 // pred_check
          %p483 = pneg %p155
        $region78: #{fine_scorer_forward.1} parent=59 // pred_check_branch
          %485 = sbr.rel (%p483) target = $region80
        $region79: #{fine_scorer_forward.1} parent=59 // pred_region
          %486 = dma.done [#allocation14], 1024
        $region80: #{fine_scorer_forward.1} parent=59 // pred_fallthru
          _
        // Predicated region
        $region81: #{fine_scorer_forward.1} parent=59 // pred_check
          %p487 = pneg %p176
        $region82: #{fine_scorer_forward.1} parent=59 // pred_check_branch
          %489 = sbr.rel (%p487) target = $region84
        $region83: #{fine_scorer_forward.1} parent=59 // pred_region
          %490 = dma.done [#allocation17], 1024
        $region84: #{fine_scorer_forward.1} parent=59 // pred_fallthru
          _
        // Predicated region
        $region85: #{fine_scorer_forward.1} parent=59 // pred_check
          %p491 = pneg %p197
        $region86: #{fine_scorer_forward.1} parent=59 // pred_check_branch
          %493 = sbr.rel (%p491) target = $region88
        $region87: #{fine_scorer_forward.1} parent=59 // pred_region
          %494 = dma.done [#allocation17], 1024
        $region88: #{fine_scorer_forward.1} parent=59 // pred_fallthru
          _
        // Predicated region
        $region89: #{fine_scorer_forward.1} parent=59 // pred_check
          %p495 = pneg %p218
        $region90: #{fine_scorer_forward.1} parent=59 // pred_check_branch
          %497 = sbr.rel (%p495) target = $region92
        $region91: #{fine_scorer_forward.1} parent=59 // pred_region
          %498 = dma.done [#allocation20], 16
        $region92: #{fine_scorer_forward.1} parent=59 // pred_fallthru
          _
        // Predicated region
        $region93: #{fine_scorer_forward.1} parent=59 // pred_check
          %p499 = pneg %p239
        $region94: #{fine_scorer_forward.1} parent=59 // pred_check_branch
          %501 = sbr.rel (%p499) target = $region96
        $region95: #{fine_scorer_forward.1} parent=59 // pred_region
          %502 = dma.done [#allocation20], 16
        $region96: #{fine_scorer_forward.1} parent=59 // pred_fallthru
          _
        %s503 = sand.u32 %s48, 1
        %s504 = scalar_lea.sflag [#allocation8], %s503
        %s505 = sand.u32 %s48, 1
        %s506 = smul.addr %s505, 16
        %s507 = scalar_lea.vmem [#allocation7], %s506
        %p508 = pneg %p61
        %p509 = pneg %p58
        %s510 = sand.u32 %s40, 1
        %s511 = scalar_lea.sflag [#allocation11], %s510
        %s512 = sand.u32 %s74, 1
        %s513 = smul.addr %s512, 128
        %s514 = scalar_lea.vmem [#allocation10], %s513
        %p515 = pneg %p87
        %p516 = pneg %p84
        %s517 = sand.u32 %s40, 1
        %s518 = scalar_lea.sflag [#allocation11], %s517
        %s519 = sand.u32 %s100, 1
        %s520 = smul.addr %s519, 16
        %s521 = scalar_lea.vmem [#allocation12], %s520
        %p522 = pneg %p113
        %p523 = pneg %p110
        %p524 = pneg %p134
        %p525 = pneg %p131
        %p526 = pneg %p155
        %p527 = pneg %p152
        %p528 = pneg %p176
        %p529 = pneg %p173
        %p530 = pneg %p197
        %p531 = pneg %p194
        %p532 = pneg %p218
        %p533 = pneg %p215
        %p534 = pneg %p239
        %p535 = pneg %p236
        %p536 = pneg %p260
        %p537 = pneg %p257
        %p538 = pneg %p286
        %p539 = pneg %p283
        %s540 = sand.u32 %s273, 1
        %s541 = scalar_lea.sflag [#allocation9], %s540
        %s542 = sand.u32 %s273, 1
        %s543 = smul.addr %s542, 16
        %s544 = scalar_lea.vmem [#allocation22], %s543
        %s545 = smul.u32 2, %s40
        %s546 = smul.u32 16, %s40
        %s547 = smul.u32 2, %s40
        %s548 = smul.u32 2, %s40
        %s549 = smul.u32 %s40, 128
        loop: start=0, step=1, limit=128
        $region97: #{fine_scorer_forward.1} parent=59 // loop_pre_header
          _
        $region98: #{fine_scorer_forward.1} parent=59 // loop_header
          %s551 = sphi 0, %s555
          %p552 = scmp.ge.s32.totalorder %s551, 128
        $region99: #{fine_scorer_forward.1} parent=59 // loop_header_branch
          %554 = sbr.rel (%p552) target = $region103
        $region100: #{fine_scorer_forward.1} parent=59 // loop_body
          %s556 = sadd.s32 %s549, %s551
          %s557 = sld [smem:[#allocation5 + %s556]]
          %s558 = smul.addr %s557, 16
          %s559 = scalar_lea.hbm %s11, %s558
          %s560 = scalar_lea.vmem [#allocation2], %s551
          // Predicated region
          $region104: #{fine_scorer_forward.1} parent=100 // pred_check
            _
          $region105: #{fine_scorer_forward.1} parent=100 // pred_check_branch
            %562 = sbr.rel target = $region107
          $region106: #{fine_scorer_forward.1} parent=100 // pred_region
            %563 = sst [smem:[#allocation25]] [#allocation24]
            %564 = sst [smem:[#allocation26]] [#allocation23]
          $region107: #{fine_scorer_forward.1} parent=100 // pred_fallthru
            _
          %566 = shalt.err (0)
          %s568 = sshll.u32 %s560, 4
          %s569 = int_to_ptr.vmem [resolvable:$true] %s568
          %571 = dma.hbm_to_vmem [thread:$0]  %s559, 16, %s569, [#allocation3]
        $region101: #{fine_scorer_forward.1} parent=59 // loop_footer
          %s555 = sadd.s32 1, %s551
        $region102: #{fine_scorer_forward.1} parent=59 // loop_footer_branch
          %550 = sbr.rel target = $region98
        $region103: #{fine_scorer_forward.1} parent=59 // loop_exit
          _
        %v572 = vld [vmem:[%s456] sm:$0xff]
        %v573 = vld [vmem:[%s456 + $0x8] sm:$0xff]
        %v574 = vld [vmem:[#allocation13] sm:$0xff]
        %v575 = vld [vmem:[#allocation13 + $0x8] sm:$0xff]
        %v576 = vld [vmem:[#allocation13 + $0x10] sm:$0xff]
        %v577 = vld [vmem:[#allocation13 + $0x18] sm:$0xff]
        %v578 = vld [vmem:[#allocation13 + $0x20] sm:$0xff]
        %v579 = vld [vmem:[#allocation13 + $0x28] sm:$0xff]
        %v580 = vld [vmem:[#allocation13 + $0x30] sm:$0xff]
        %v581 = vld [vmem:[#allocation13 + $0x38] sm:$0xff]
        %vm582 = vcmask 523264
        %v584 = vsel %vm582, %v572, 0
        %v587 = vsel %vm582, %v573, 0
        %589 = vmatprep.subr.mxu0 0.0
        %590 = vmatpush1.msra.mxu0 %v574
        %591 = vmatprep.subr.mxu0 0.0
        %592 = vmatpush1.msra.mxu0 %v575
        %593 = vmatprep.subr.mxu0 0.0
        %594 = vmatpush1.msra.mxu0 %v576
        %595 = vmatprep.subr.mxu0 0.0
        %596 = vmatpush1.msra.mxu0 %v577
        %597 = vmatprep.subr.mxu0 0.0
        %598 = vmatpush1.msra.mxu0 %v578
        %599 = vmatprep.subr.mxu0 0.0
        %600 = vmatpush1.msra.mxu0 %v579
        %601 = vmatprep.subr.mxu0 0.0
        %602 = vmatpush1.msra.mxu0 %v580
        %603 = vmatprep.subr.mxu0 0.0
        %604 = vmatpush1.msra.mxu0 %v581
        %605 = vmatprep.subr.mxu0 0.0
        %606 = vmatpush1.msra.mxu0 0.0
        %607 = vmatprep.subr.mxu0 0.0
        %608 = vmatpush1.msra.mxu0 0.0
        %609 = vmatprep.subr.mxu0 0.0
        %610 = vmatpush1.msra.mxu0 0.0
        %611 = vmatprep.subr.mxu0 0.0
        %612 = vmatpush1.msra.mxu0 0.0
        %613 = vmatprep.subr.mxu0 0.0
        %614 = vmatpush1.msra.mxu0 0.0
        %615 = vmatprep.subr.mxu0 0.0
        %616 = vmatpush1.msra.mxu0 0.0
        %617 = vmatprep.subr.mxu0 0.0
        %618 = vmatpush1.msra.mxu0 0.0
        %619 = vmatprep.subr.mxu0 0.0
        %620 = vmatpush1.msra.mxu0 0.0
        %621 = vmatprep.subr.mxu0 0.0
        %622 = vmatpush1.msra.mxu0 0.0
        %623 = vmatprep.subr.mxu0 0.0
        %624 = vmatpush1.msra.mxu0 0.0
        %625 = vmatprep.subr.mxu0 0.0
        %626 = vmatpush1.msra.mxu0 0.0
        %627 = vmatprep.subr.mxu0 0.0
        %628 = vmatpush1.msra.mxu0 0.0
        %629 = vmatprep.subr.mxu0 0.0
        %630 = vmatpush1.msra.mxu0 0.0
        %631 = vmatprep.subr.mxu0 0.0
        %632 = vmatpush1.msra.mxu0 0.0
        %633 = vmatprep.subr.mxu0 0.0
        %634 = vmatpush1.msra.mxu0 0.0
        %635 = vmatprep.subr.mxu0 0.0
        %636 = vmatpush1.msra.mxu0 0.0
        %637 = vmatprep.subr.mxu0 0.0
        %638 = vmatpush1.msra.mxu0 0.0
        %639 = vmatprep.subr.mxu0 0.0
        %640 = vmatpush1.msra.mxu0 0.0
        %641 = vmatprep.subr.mxu0 0.0
        %642 = vmatpush1.msra.mxu0 0.0
        %643 = vmatprep.subr.mxu0 0.0
        %644 = vmatpush1.msra.mxu0 0.0
        %645 = vmatprep.subr.mxu0 0.0
        %646 = vmatpush1.msra.mxu0 0.0
        %647 = vmatprep.subr.mxu0 0.0
        %648 = vmatpush1.msra.mxu0 0.0
        %649 = vmatprep.subr.mxu0 0.0
        %650 = vmatpush1.msra.mxu0 0.0
        %651 = vmatprep.subr.mxu0 0.0
        %652 = vmatpush1.msra.mxu0 0.0
        %653 = vmatprep.mubr.f32.mxu0 0.0
        %654 = vmatmul.mubr.f32.gmra.mrb[0].mxu0 %v584
        %v655 = vpop.f32.mrb[0].mxu0
        %v656 = vadd.f32 0.0, %v655
        %v657 = vpop.f32.mrb[0].mxu0
        %658 = vmatprep.mubr.f32.mxu0 0.0
        %659 = vmatmul.mubr.f32.gmra.mrb[0].mxu0 %v587
        %v660 = vpop.f32.mrb[0].mxu0
        %v661 = vadd.f32 0.0, %v660
        %v662 = vpop.f32.mrb[0].mxu0
        %663 = vdwg.mxu0
        %v664 = vld [vmem:[%s465] sm:$0xff]
        %v665 = vld [vmem:[%s465 + $0x8] sm:$0xff]
        %v666 = vld [vmem:[%s465 + $0x10] sm:$0xff]
        %v667 = vld [vmem:[%s465 + $0x18] sm:$0xff]
        %v668 = vld [vmem:[%s465 + $0x20] sm:$0xff]
        %v669 = vld [vmem:[%s465 + $0x28] sm:$0xff]
        %v670 = vld [vmem:[%s465 + $0x30] sm:$0xff]
        %v671 = vld [vmem:[%s465 + $0x38] sm:$0xff]
        %v672 = vld [vmem:[%s465 + $0x40] sm:$0xff]
        %v673 = vld [vmem:[%s465 + $0x48] sm:$0xff]
        %v674 = vld [vmem:[%s465 + $0x50] sm:$0xff]
        %v675 = vld [vmem:[%s465 + $0x58] sm:$0xff]
        %v676 = vld [vmem:[%s465 + $0x60] sm:$0xff]
        %v677 = vld [vmem:[%s465 + $0x68] sm:$0xff]
        %v678 = vld [vmem:[%s465 + $0x70] sm:$0xff]
        %v679 = vld [vmem:[%s465 + $0x78] sm:$0xff]
        %v680 = vld [vmem:[#allocation18] sm:$0xff]
        %v681 = vld [vmem:[#allocation18 + $0x8] sm:$0xff]
        %v682 = vld [vmem:[#allocation18 + $0x10] sm:$0xff]
        %v683 = vld [vmem:[#allocation18 + $0x18] sm:$0xff]
        %v684 = vld [vmem:[#allocation18 + $0x20] sm:$0xff]
        %v685 = vld [vmem:[#allocation18 + $0x28] sm:$0xff]
        %v686 = vld [vmem:[#allocation18 + $0x30] sm:$0xff]
        %v687 = vld [vmem:[#allocation18 + $0x38] sm:$0xf]
        %vm688 = vcmask 490496
        %v690 = vsel %vm688, %v664, 0
        %v693 = vsel %vm688, %v665, 0
        %v696 = vsel %vm688, %v666, 0
        %v699 = vsel %vm688, %v667, 0
        %v702 = vsel %vm688, %v668, 0
        %v705 = vsel %vm688, %v669, 0
        %v708 = vsel %vm688, %v670, 0
        %v711 = vsel %vm688, %v671, 0
        %v714 = vsel %vm688, %v672, 0
        %v717 = vsel %vm688, %v673, 0
        %v720 = vsel %vm688, %v674, 0
        %v723 = vsel %vm688, %v675, 0
        %v726 = vsel %vm688, %v676, 0
        %v729 = vsel %vm688, %v677, 0
        %v732 = vsel %vm688, %v678, 0
        %v735 = vsel %vm688, %v679, 0
        %vm737 = vcmask 1043456
        %v739 = vsel %vm737, %v687, 0
        %741 = vmatprep.subr.mxu0 0.0
        %742 = vmatpush1.msra.mxu0 %v680
        %743 = vmatprep.subr.mxu0 0.0
        %744 = vmatpush1.msra.mxu0 %v681
        %745 = vmatprep.subr.mxu0 0.0
        %746 = vmatpush1.msra.mxu0 %v682
        %747 = vmatprep.subr.mxu0 0.0
        %748 = vmatpush1.msra.mxu0 %v683
        %749 = vmatprep.subr.mxu0 0.0
        %750 = vmatpush1.msra.mxu0 %v684
        %751 = vmatprep.subr.mxu0 0.0
        %752 = vmatpush1.msra.mxu0 %v685
        %753 = vmatprep.subr.mxu0 0.0
        %754 = vmatpush1.msra.mxu0 %v686
        %755 = vmatprep.subr.mxu0 0.0
        %756 = vmatpush1.msra.mxu0 %v739
        %757 = vmatprep.subr.mxu0 0.0
        %758 = vmatpush1.msra.mxu0 0.0
        %759 = vmatprep.subr.mxu0 0.0
        %760 = vmatpush1.msra.mxu0 0.0
        %761 = vmatprep.subr.mxu0 0.0
        %762 = vmatpush1.msra.mxu0 0.0
        %763 = vmatprep.subr.mxu0 0.0
        %764 = vmatpush1.msra.mxu0 0.0
        %765 = vmatprep.subr.mxu0 0.0
        %766 = vmatpush1.msra.mxu0 0.0
        %767 = vmatprep.subr.mxu0 0.0
        %768 = vmatpush1.msra.mxu0 0.0
        %769 = vmatprep.subr.mxu0 0.0
        %770 = vmatpush1.msra.mxu0 0.0
        %771 = vmatprep.subr.mxu0 0.0
        %772 = vmatpush1.msra.mxu0 0.0
        %773 = vmatprep.subr.mxu0 0.0
        %774 = vmatpush1.msra.mxu0 0.0
        %775 = vmatprep.subr.mxu0 0.0
        %776 = vmatpush1.msra.mxu0 0.0
        %777 = vmatprep.subr.mxu0 0.0
        %778 = vmatpush1.msra.mxu0 0.0
        %779 = vmatprep.subr.mxu0 0.0
        %780 = vmatpush1.msra.mxu0 0.0
        %781 = vmatprep.subr.mxu0 0.0
        %782 = vmatpush1.msra.mxu0 0.0
        %783 = vmatprep.subr.mxu0 0.0
        %784 = vmatpush1.msra.mxu0 0.0
        %785 = vmatprep.subr.mxu0 0.0
        %786 = vmatpush1.msra.mxu0 0.0
        %787 = vmatprep.subr.mxu0 0.0
        %788 = vmatpush1.msra.mxu0 0.0
        %789 = vmatprep.subr.mxu0 0.0
        %790 = vmatpush1.msra.mxu0 0.0
        %791 = vmatprep.subr.mxu0 0.0
        %792 = vmatpush1.msra.mxu0 0.0
        %793 = vmatprep.subr.mxu0 0.0
        %794 = vmatpush1.msra.mxu0 0.0
        %795 = vmatprep.subr.mxu0 0.0
        %796 = vmatpush1.msra.mxu0 0.0
        %797 = vmatprep.subr.mxu0 0.0
        %798 = vmatpush1.msra.mxu0 0.0
        %799 = vmatprep.subr.mxu0 0.0
        %800 = vmatpush1.msra.mxu0 0.0
        %801 = vmatprep.subr.mxu0 0.0
        %802 = vmatpush1.msra.mxu0 0.0
        %803 = vmatprep.subr.mxu0 0.0
        %804 = vmatpush1.msra.mxu0 0.0
        %805 = vmatprep.mubr.f32.mxu0 0.0
        %806 = vmatmul.mubr.f32.gmra.mrb[0].mxu0 %v690
        %v807 = vpop.f32.mrb[0].mxu0
        %v808 = vadd.f32 0.0, %v807
        %v809 = vpop.f32.mrb[0].mxu0
        %810 = vmatprep.mubr.f32.mxu0 0.0
        %811 = vmatmul.mubr.f32.gmra.mrb[0].mxu0 %v693
        %v812 = vpop.f32.mrb[0].mxu0
        %v813 = vadd.f32 0.0, %v812
        %v814 = vpop.f32.mrb[0].mxu0
        %815 = vmatprep.mubr.f32.mxu0 0.0
        %816 = vmatmul.mubr.f32.gmra.mrb[0].mxu0 %v696
        %v817 = vpop.f32.mrb[0].mxu0
        %v818 = vadd.f32 0.0, %v817
        %v819 = vpop.f32.mrb[0].mxu0
        %820 = vmatprep.mubr.f32.mxu0 0.0
        %821 = vmatmul.mubr.f32.gmra.mrb[0].mxu0 %v699
        %v822 = vpop.f32.mrb[0].mxu0
        %v823 = vadd.f32 0.0, %v822
        %v824 = vpop.f32.mrb[0].mxu0
        %825 = vmatprep.mubr.f32.mxu0 0.0
        %826 = vmatmul.mubr.f32.gmra.mrb[0].mxu0 %v702
        %v827 = vpop.f32.mrb[0].mxu0
        %v828 = vadd.f32 0.0, %v827
        %v829 = vpop.f32.mrb[0].mxu0
        %830 = vmatprep.mubr.f32.mxu0 0.0
        %831 = vmatmul.mubr.f32.gmra.mrb[0].mxu0 %v705
        %v832 = vpop.f32.mrb[0].mxu0
        %v833 = vadd.f32 0.0, %v832
        %v834 = vpop.f32.mrb[0].mxu0
        %835 = vmatprep.mubr.f32.mxu0 0.0
        %836 = vmatmul.mubr.f32.gmra.mrb[0].mxu0 %v708
        %v837 = vpop.f32.mrb[0].mxu0
        %v838 = vadd.f32 0.0, %v837
        %v839 = vpop.f32.mrb[0].mxu0
        %840 = vmatprep.mubr.f32.mxu0 0.0
        %841 = vmatmul.mubr.f32.gmra.mrb[0].mxu0 %v711
        %v842 = vpop.f32.mrb[0].mxu0
        %v843 = vadd.f32 0.0, %v842
        %v844 = vpop.f32.mrb[0].mxu0
        %845 = vmatprep.mubr.f32.mxu0 0.0
        %846 = vmatmul.mubr.f32.gmra.mrb[0].mxu0 %v714
        %v847 = vpop.f32.mrb[0].mxu0
        %v848 = vadd.f32 0.0, %v847
        %v849 = vpop.f32.mrb[0].mxu0
        %850 = vmatprep.mubr.f32.mxu0 0.0
        %851 = vmatmul.mubr.f32.gmra.mrb[0].mxu0 %v717
        %v852 = vpop.f32.mrb[0].mxu0
        %v853 = vadd.f32 0.0, %v852
        %v854 = vpop.f32.mrb[0].mxu0
        %855 = vmatprep.mubr.f32.mxu0 0.0
        %856 = vmatmul.mubr.f32.gmra.mrb[0].mxu0 %v720
        %v857 = vpop.f32.mrb[0].mxu0
        %v858 = vadd.f32 0.0, %v857
        %v859 = vpop.f32.mrb[0].mxu0
        %860 = vmatprep.mubr.f32.mxu0 0.0
        %861 = vmatmul.mubr.f32.gmra.mrb[0].mxu0 %v723
        %v862 = vpop.f32.mrb[0].mxu0
        %v863 = vadd.f32 0.0, %v862
        %v864 = vpop.f32.mrb[0].mxu0
        %865 = vmatprep.mubr.f32.mxu0 0.0
        %866 = vmatmul.mubr.f32.gmra.mrb[0].mxu0 %v726
        %v867 = vpop.f32.mrb[0].mxu0
        %v868 = vadd.f32 0.0, %v867
        %v869 = vpop.f32.mrb[0].mxu0
        %870 = vmatprep.mubr.f32.mxu0 0.0
        %871 = vmatmul.mubr.f32.gmra.mrb[0].mxu0 %v729
        %v872 = vpop.f32.mrb[0].mxu0
        %v873 = vadd.f32 0.0, %v872
        %v874 = vpop.f32.mrb[0].mxu0
        %875 = vmatprep.mubr.f32.mxu0 0.0
        %876 = vmatmul.mubr.f32.gmra.mrb[0].mxu0 %v732
        %v877 = vpop.f32.mrb[0].mxu0
        %v878 = vadd.f32 0.0, %v877
        %v879 = vpop.f32.mrb[0].mxu0
        %880 = vmatprep.mubr.f32.mxu0 0.0
        %881 = vmatmul.mubr.f32.gmra.mrb[0].mxu0 %v735
        %v882 = vpop.f32.mrb[0].mxu0
        %v883 = vadd.f32 0.0, %v882
        %v884 = vpop.f32.mrb[0].mxu0
        %885 = vdwg.mxu0
        loop: start=0, step=1, limit=128
        $region108: #{fine_scorer_forward.1} parent=59 // loop_pre_header
          _
        $region109: #{fine_scorer_forward.1} parent=59 // loop_header
          %s887 = sphi 0, %s891
          %p888 = scmp.ge.s32.totalorder %s887, 128
        $region110: #{fine_scorer_forward.1} parent=59 // loop_header_branch
          %890 = sbr.rel (%p888) target = $region114
        $region111: #{fine_scorer_forward.1} parent=59 // loop_body
          %893 = dma.done [#allocation3], 16
        $region112: #{fine_scorer_forward.1} parent=59 // loop_footer
          %s891 = sadd.s32 1, %s887
        $region113: #{fine_scorer_forward.1} parent=59 // loop_footer_branch
          %886 = sbr.rel target = $region109
        $region114: #{fine_scorer_forward.1} parent=59 // loop_exit
          _
        %v894 = vld [vmem:[#allocation2] sm:$0xff]
        %v895 = vld [vmem:[#allocation2 + $0x8] sm:$0xff]
        %v896 = vld [vmem:[#allocation2 + $0x10] sm:$0xff]
        %v897 = vld [vmem:[#allocation2 + $0x18] sm:$0xff]
        %v898 = vld [vmem:[#allocation2 + $0x20] sm:$0xff]
        %v899 = vld [vmem:[#allocation2 + $0x28] sm:$0xff]
        %v900 = vld [vmem:[#allocation2 + $0x30] sm:$0xff]
        %v901 = vld [vmem:[#allocation2 + $0x38] sm:$0xff]
        %v902 = vld [vmem:[#allocation2 + $0x40] sm:$0xff]
        %v903 = vld [vmem:[#allocation2 + $0x48] sm:$0xff]
        %v904 = vld [vmem:[#allocation2 + $0x50] sm:$0xff]
        %v905 = vld [vmem:[#allocation2 + $0x58] sm:$0xff]
        %v906 = vld [vmem:[#allocation2 + $0x60] sm:$0xff]
        %v907 = vld [vmem:[#allocation2 + $0x68] sm:$0xff]
        %v908 = vld [vmem:[#allocation2 + $0x70] sm:$0xff]
        %v909 = vld [vmem:[#allocation2 + $0x78] sm:$0xff]
        %v910 = vcombine.high %v572, %v572
        %v912 = vunpack.c.l.s4 1966171168
        %v913 = vunpack.c.0.s8 %v912
        %v914 = vlaneseq
        %v915 = vshrl.u32 %v914, 7
        %v916 = vsub.s32 %v913, %v915
        %v917 = vrot.slane %v572, %v916
        %v919 = vunpack.c.l.s4 1966171168
        %v920 = vunpack.c.0.s8 %v919
        %v921 = vlaneseq
        %v922 = vshrl.u32 %v921, 7
        %v923 = vsub.s32 %v920, %v922
        %v924 = vrot.slane %v910, %v923
        %v925 = vcombine.high %v917, %v917
        %v926 = vcombine.high %v924, %v924
        %v928 = vunpack.c.l.s4 1966171168
        %v929 = vunpack.c.0.s8 %v928
        %v930 = vlaneseq
        %v931 = vshrl.u32 %v930, 7
        %v932 = vsub.s32 %v929, %v931
        %v933 = vrot.slane %v917, %v932
        %v935 = vunpack.c.l.s4 1966171168
        %v936 = vunpack.c.0.s8 %v935
        %v937 = vlaneseq
        %v938 = vshrl.u32 %v937, 7
        %v939 = vsub.s32 %v936, %v938
        %v940 = vrot.slane %v924, %v939
        %v942 = vunpack.c.l.s4 1966171168
        %v943 = vunpack.c.0.s8 %v942
        %v944 = vlaneseq
        %v945 = vshrl.u32 %v944, 7
        %v946 = vsub.s32 %v943, %v945
        %v947 = vrot.slane %v925, %v946
        %v949 = vunpack.c.l.s4 1966171168
        %v950 = vunpack.c.0.s8 %v949
        %v951 = vlaneseq
        %v952 = vshrl.u32 %v951, 7
        %v953 = vsub.s32 %v950, %v952
        %v954 = vrot.slane %v926, %v953
        %v955 = vcombine.high %v933, %v933
        %v956 = vcombine.high %v940, %v940
        %v957 = vcombine.high %v947, %v947
        %v958 = vcombine.high %v954, %v954
        %v959 = vcombine.high %v573, %v573
        %v961 = vunpack.c.l.s4 1966171168
        %v962 = vunpack.c.0.s8 %v961
        %v963 = vlaneseq
        %v964 = vshrl.u32 %v963, 7
        %v965 = vsub.s32 %v962, %v964
        %v966 = vrot.slane %v573, %v965
        %v968 = vunpack.c.l.s4 1966171168
        %v969 = vunpack.c.0.s8 %v968
        %v970 = vlaneseq
        %v971 = vshrl.u32 %v970, 7
        %v972 = vsub.s32 %v969, %v971
        %v973 = vrot.slane %v959, %v972
        %v974 = vcombine.high %v966, %v966
        %v975 = vcombine.high %v973, %v973
        %v977 = vunpack.c.l.s4 1966171168
        %v978 = vunpack.c.0.s8 %v977
        %v979 = vlaneseq
        %v980 = vshrl.u32 %v979, 7
        %v981 = vsub.s32 %v978, %v980
        %v982 = vrot.slane %v966, %v981
        %v984 = vunpack.c.l.s4 1966171168
        %v985 = vunpack.c.0.s8 %v984
        %v986 = vlaneseq
        %v987 = vshrl.u32 %v986, 7
        %v988 = vsub.s32 %v985, %v987
        %v989 = vrot.slane %v973, %v988
        %v991 = vunpack.c.l.s4 1966171168
        %v992 = vunpack.c.0.s8 %v991
        %v993 = vlaneseq
        %v994 = vshrl.u32 %v993, 7
        %v995 = vsub.s32 %v992, %v994
        %v996 = vrot.slane %v974, %v995
        %v998 = vunpack.c.l.s4 1966171168
        %v999 = vunpack.c.0.s8 %v998
        %v1000 = vlaneseq
        %v1001 = vshrl.u32 %v1000, 7
        %v1002 = vsub.s32 %v999, %v1001
        %v1003 = vrot.slane %v975, %v1002
        %v1004 = vcombine.high %v982, %v982
        %v1005 = vcombine.high %v989, %v989
        %v1006 = vcombine.high %v996, %v996
        %v1007 = vcombine.high %v1003, %v1003
        %v1008 = vlaneseq
        %v1009 = vshrl.u32 %v1008, 7
        %v1010 = vsub.s32 0, %v1009
        %v1011 = vrot.slane %v933, %v1010
        %v1012 = vlaneseq
        %v1013 = vshrl.u32 %v1012, 7
        %v1014 = vsub.s32 0, %v1013
        %v1015 = vrot.slane %v947, %v1014
        %v1016 = vlaneseq
        %v1017 = vshrl.u32 %v1016, 7
        %v1018 = vsub.s32 0, %v1017
        %v1019 = vrot.slane %v955, %v1018
        %v1020 = vlaneseq
        %v1021 = vshrl.u32 %v1020, 7
        %v1022 = vsub.s32 0, %v1021
        %v1023 = vrot.slane %v957, %v1022
        %v1024 = vlaneseq
        %v1025 = vshrl.u32 %v1024, 7
        %v1026 = vsub.s32 0, %v1025
        %v1027 = vrot.slane %v940, %v1026
        %v1028 = vlaneseq
        %v1029 = vshrl.u32 %v1028, 7
        %v1030 = vsub.s32 0, %v1029
        %v1031 = vrot.slane %v954, %v1030
        %v1032 = vlaneseq
        %v1033 = vshrl.u32 %v1032, 7
        %v1034 = vsub.s32 0, %v1033
        %v1035 = vrot.slane %v956, %v1034
        %v1036 = vlaneseq
        %v1037 = vshrl.u32 %v1036, 7
        %v1038 = vsub.s32 0, %v1037
        %v1039 = vrot.slane %v958, %v1038
        %v1040 = vlaneseq
        %v1041 = vshrl.u32 %v1040, 7
        %v1042 = vsub.s32 0, %v1041
        %v1043 = vrot.slane %v982, %v1042
        %v1044 = vlaneseq
        %v1045 = vshrl.u32 %v1044, 7
        %v1046 = vsub.s32 0, %v1045
        %v1047 = vrot.slane %v996, %v1046
        %v1048 = vlaneseq
        %v1049 = vshrl.u32 %v1048, 7
        %v1050 = vsub.s32 0, %v1049
        %v1051 = vrot.slane %v1004, %v1050
        %v1052 = vlaneseq
        %v1053 = vshrl.u32 %v1052, 7
        %v1054 = vsub.s32 0, %v1053
        %v1055 = vrot.slane %v1006, %v1054
        %v1056 = vlaneseq
        %v1057 = vshrl.u32 %v1056, 7
        %v1058 = vsub.s32 0, %v1057
        %v1059 = vrot.slane %v989, %v1058
        %v1060 = vlaneseq
        %v1061 = vshrl.u32 %v1060, 7
        %v1062 = vsub.s32 0, %v1061
        %v1063 = vrot.slane %v1003, %v1062
        %v1064 = vlaneseq
        %v1065 = vshrl.u32 %v1064, 7
        %v1066 = vsub.s32 0, %v1065
        %v1067 = vrot.slane %v1005, %v1066
        %v1068 = vlaneseq
        %v1069 = vshrl.u32 %v1068, 7
        %v1070 = vsub.s32 0, %v1069
        %v1071 = vrot.slane %v1007, %v1070
        %v1088 = vmul.f32 %v1011, %v894
        %v1089 = vmul.f32 %v1015, %v895
        %v1090 = vmul.f32 %v1019, %v896
        %v1091 = vmul.f32 %v1023, %v897
        %v1092 = vmul.f32 %v1027, %v898
        %v1093 = vmul.f32 %v1031, %v899
        %v1094 = vmul.f32 %v1035, %v900
        %v1095 = vmul.f32 %v1039, %v901
        %v1096 = vmul.f32 %v1043, %v902
        %v1097 = vmul.f32 %v1047, %v903
        %v1098 = vmul.f32 %v1051, %v904
        %v1099 = vmul.f32 %v1055, %v905
        %v1100 = vmul.f32 %v1059, %v906
        %v1101 = vmul.f32 %v1063, %v907
        %v1102 = vmul.f32 %v1067, %v908
        %v1103 = vmul.f32 %v1071, %v909
        %v1104 = vld [vmem:[#allocation15] sm:$0xff]
        %v1105 = vld [vmem:[#allocation15 + $0x8] sm:$0xff]
        %v1106 = vld [vmem:[#allocation15 + $0x10] sm:$0xff]
        %v1107 = vld [vmem:[#allocation15 + $0x18] sm:$0xff]
        %v1108 = vld [vmem:[#allocation15 + $0x20] sm:$0xff]
        %v1109 = vld [vmem:[#allocation15 + $0x28] sm:$0xff]
        %v1110 = vld [vmem:[#allocation15 + $0x30] sm:$0xff]
        %v1111 = vld [vmem:[#allocation15 + $0x38] sm:$0xff]
        %v1112 = vld [vmem:[#allocation16] sm:$0xff]
        %v1113 = vld [vmem:[#allocation16 + $0x8] sm:$0xff]
        %v1114 = vld [vmem:[#allocation16 + $0x10] sm:$0xff]
        %v1115 = vld [vmem:[#allocation16 + $0x18] sm:$0xff]
        %v1116 = vld [vmem:[#allocation16 + $0x20] sm:$0xff]
        %v1117 = vld [vmem:[#allocation16 + $0x28] sm:$0xff]
        %v1118 = vld [vmem:[#allocation16 + $0x30] sm:$0xff]
        %v1119 = vld [vmem:[#allocation16 + $0x38] sm:$0xff]
        %v1121 = vsel %vm582, %v1088, 0
        %v1124 = vsel %vm582, %v1089, 0
        %v1127 = vsel %vm582, %v1090, 0
        %v1130 = vsel %vm582, %v1091, 0
        %v1133 = vsel %vm582, %v1092, 0
        %v1136 = vsel %vm582, %v1093, 0
        %v1139 = vsel %vm582, %v1094, 0
        %v1142 = vsel %vm582, %v1095, 0
        %v1145 = vsel %vm582, %v1096, 0
        %v1148 = vsel %vm582, %v1097, 0
        %v1151 = vsel %vm582, %v1098, 0
        %v1154 = vsel %vm582, %v1099, 0
        %v1157 = vsel %vm582, %v1100, 0
        %v1160 = vsel %vm582, %v1101, 0
        %v1163 = vsel %vm582, %v1102, 0
        %v1166 = vsel %vm582, %v1103, 0
        %1168 = vmatprep.subr.mxu0 0.0
        %1169 = vmatpush1.msra.mxu0 %v1112
        %1170 = vmatprep.subr.mxu0 0.0
        %1171 = vmatpush1.msra.mxu0 %v1113
        %1172 = vmatprep.subr.mxu0 0.0
        %1173 = vmatpush1.msra.mxu0 %v1114
        %1174 = vmatprep.subr.mxu0 0.0
        %1175 = vmatpush1.msra.mxu0 %v1115
        %1176 = vmatprep.subr.mxu0 0.0
        %1177 = vmatpush1.msra.mxu0 %v1116
        %1178 = vmatprep.subr.mxu0 0.0
        %1179 = vmatpush1.msra.mxu0 %v1117
        %1180 = vmatprep.subr.mxu0 0.0
        %1181 = vmatpush1.msra.mxu0 %v1118
        %1182 = vmatprep.subr.mxu0 0.0
        %1183 = vmatpush1.msra.mxu0 %v1119
        %1184 = vmatprep.subr.mxu0 0.0
        %1185 = vmatpush1.msra.mxu0 0.0
        %1186 = vmatprep.subr.mxu0 0.0
        %1187 = vmatpush1.msra.mxu0 0.0
        %1188 = vmatprep.subr.mxu0 0.0
        %1189 = vmatpush1.msra.mxu0 0.0
        %1190 = vmatprep.subr.mxu0 0.0
        %1191 = vmatpush1.msra.mxu0 0.0
        %1192 = vmatprep.subr.mxu0 0.0
        %1193 = vmatpush1.msra.mxu0 0.0
        %1194 = vmatprep.subr.mxu0 0.0
        %1195 = vmatpush1.msra.mxu0 0.0
        %1196 = vmatprep.subr.mxu0 0.0
        %1197 = vmatpush1.msra.mxu0 0.0
        %1198 = vmatprep.subr.mxu0 0.0
        %1199 = vmatpush1.msra.mxu0 0.0
        %1200 = vmatprep.subr.mxu0 0.0
        %1201 = vmatpush1.msra.mxu0 0.0
        %1202 = vmatprep.subr.mxu0 0.0
        %1203 = vmatpush1.msra.mxu0 0.0
        %1204 = vmatprep.subr.mxu0 0.0
        %1205 = vmatpush1.msra.mxu0 0.0
        %1206 = vmatprep.subr.mxu0 0.0
        %1207 = vmatpush1.msra.mxu0 0.0
        %1208 = vmatprep.subr.mxu0 0.0
        %1209 = vmatpush1.msra.mxu0 0.0
        %1210 = vmatprep.subr.mxu0 0.0
        %1211 = vmatpush1.msra.mxu0 0.0
        %1212 = vmatprep.subr.mxu0 0.0
        %1213 = vmatpush1.msra.mxu0 0.0
        %1214 = vmatprep.subr.mxu0 0.0
        %1215 = vmatpush1.msra.mxu0 0.0
        %1216 = vmatprep.subr.mxu0 0.0
        %1217 = vmatpush1.msra.mxu0 0.0
        %1218 = vmatprep.subr.mxu0 0.0
        %1219 = vmatpush1.msra.mxu0 0.0
        %1220 = vmatprep.subr.mxu0 0.0
        %1221 = vmatpush1.msra.mxu0 0.0
        %1222 = vmatprep.subr.mxu0 0.0
        %1223 = vmatpush1.msra.mxu0 0.0
        %1224 = vmatprep.subr.mxu0 0.0
        %1225 = vmatpush1.msra.mxu0 0.0
        %1226 = vmatprep.subr.mxu0 0.0
        %1227 = vmatpush1.msra.mxu0 0.0
        %1228 = vmatprep.subr.mxu0 0.0
        %1229 = vmatpush1.msra.mxu0 0.0
        %1230 = vmatprep.subr.mxu0 0.0
        %1231 = vmatpush1.msra.mxu0 0.0
        %1232 = vmatprep.mubr.f32.mxu0 0.0
        %1233 = vmatmul.mubr.f32.gmra.mrb[0].mxu0 %v1121
        %v1234 = vpop.f32.mrb[0].mxu0
        %v1235 = vadd.f32 0.0, %v1234
        %v1236 = vpop.f32.mrb[0].mxu0
        %1237 = vmatprep.mubr.f32.mxu0 0.0
        %1238 = vmatmul.mubr.f32.gmra.mrb[0].mxu0 %v1124
        %v1239 = vpop.f32.mrb[0].mxu0
        %v1240 = vadd.f32 0.0, %v1239
        %v1241 = vpop.f32.mrb[0].mxu0
        %1242 = vmatprep.mubr.f32.mxu0 0.0
        %1243 = vmatmul.mubr.f32.gmra.mrb[0].mxu0 %v1127
        %v1244 = vpop.f32.mrb[0].mxu0
        %v1245 = vadd.f32 0.0, %v1244
        %v1246 = vpop.f32.mrb[0].mxu0
        %1247 = vmatprep.mubr.f32.mxu0 0.0
        %1248 = vmatmul.mubr.f32.gmra.mrb[0].mxu0 %v1130
        %v1249 = vpop.f32.mrb[0].mxu0
        %v1250 = vadd.f32 0.0, %v1249
        %v1251 = vpop.f32.mrb[0].mxu0
        %1252 = vmatprep.mubr.f32.mxu0 0.0
        %1253 = vmatmul.mubr.f32.gmra.mrb[0].mxu0 %v1133
        %v1254 = vpop.f32.mrb[0].mxu0
        %v1255 = vadd.f32 0.0, %v1254
        %v1256 = vpop.f32.mrb[0].mxu0
        %1257 = vmatprep.mubr.f32.mxu0 0.0
        %1258 = vmatmul.mubr.f32.gmra.mrb[0].mxu0 %v1136
        %v1259 = vpop.f32.mrb[0].mxu0
        %v1260 = vadd.f32 0.0, %v1259
        %v1261 = vpop.f32.mrb[0].mxu0
        %1262 = vmatprep.mubr.f32.mxu0 0.0
        %1263 = vmatmul.mubr.f32.gmra.mrb[0].mxu0 %v1139
        %v1264 = vpop.f32.mrb[0].mxu0
        %v1265 = vadd.f32 0.0, %v1264
        %v1266 = vpop.f32.mrb[0].mxu0
        %1267 = vmatprep.mubr.f32.mxu0 0.0
        %1268 = vmatmul.mubr.f32.gmra.mrb[0].mxu0 %v1142
        %v1269 = vpop.f32.mrb[0].mxu0
        %v1270 = vadd.f32 0.0, %v1269
        %v1271 = vpop.f32.mrb[0].mxu0
        %1272 = vmatprep.mubr.f32.mxu0 0.0
        %1273 = vmatmul.mubr.f32.gmra.mrb[0].mxu0 %v1145
        %v1274 = vpop.f32.mrb[0].mxu0
        %v1275 = vadd.f32 0.0, %v1274
        %v1276 = vpop.f32.mrb[0].mxu0
        %1277 = vmatprep.mubr.f32.mxu0 0.0
        %1278 = vmatmul.mubr.f32.gmra.mrb[0].mxu0 %v1148
        %v1279 = vpop.f32.mrb[0].mxu0
        %v1280 = vadd.f32 0.0, %v1279
        %v1281 = vpop.f32.mrb[0].mxu0
        %1282 = vmatprep.mubr.f32.mxu0 0.0
        %1283 = vmatmul.mubr.f32.gmra.mrb[0].mxu0 %v1151
        %v1284 = vpop.f32.mrb[0].mxu0
        %v1285 = vadd.f32 0.0, %v1284
        %v1286 = vpop.f32.mrb[0].mxu0
        %1287 = vmatprep.mubr.f32.mxu0 0.0
        %1288 = vmatmul.mubr.f32.gmra.mrb[0].mxu0 %v1154
        %v1289 = vpop.f32.mrb[0].mxu0
        %v1290 = vadd.f32 0.0, %v1289
        %v1291 = vpop.f32.mrb[0].mxu0
        %1292 = vmatprep.mubr.f32.mxu0 0.0
        %1293 = vmatmul.mubr.f32.gmra.mrb[0].mxu0 %v1157
        %v1294 = vpop.f32.mrb[0].mxu0
        %v1295 = vadd.f32 0.0, %v1294
        %v1296 = vpop.f32.mrb[0].mxu0
        %1297 = vmatprep.mubr.f32.mxu0 0.0
        %1298 = vmatmul.mubr.f32.gmra.mrb[0].mxu0 %v1160
        %v1299 = vpop.f32.mrb[0].mxu0
        %v1300 = vadd.f32 0.0, %v1299
        %v1301 = vpop.f32.mrb[0].mxu0
        %1302 = vmatprep.mubr.f32.mxu0 0.0
        %1303 = vmatmul.mubr.f32.gmra.mrb[0].mxu0 %v1163
        %v1304 = vpop.f32.mrb[0].mxu0
        %v1305 = vadd.f32 0.0, %v1304
        %v1306 = vpop.f32.mrb[0].mxu0
        %1307 = vmatprep.mubr.f32.mxu0 0.0
        %1308 = vmatmul.mubr.f32.gmra.mrb[0].mxu0 %v1166
        %v1309 = vpop.f32.mrb[0].mxu0
        %v1310 = vadd.f32 0.0, %v1309
        %v1311 = vpop.f32.mrb[0].mxu0
        %1312 = vdwg.mxu0
        %v1314 = vsel %vm582, %v894, 0
        %v1317 = vsel %vm582, %v895, 0
        %v1320 = vsel %vm582, %v896, 0
        %v1323 = vsel %vm582, %v897, 0
        %v1326 = vsel %vm582, %v898, 0
        %v1329 = vsel %vm582, %v899, 0
        %v1332 = vsel %vm582, %v900, 0
        %v1335 = vsel %vm582, %v901, 0
        %v1338 = vsel %vm582, %v902, 0
        %v1341 = vsel %vm582, %v903, 0
        %v1344 = vsel %vm582, %v904, 0
        %v1347 = vsel %vm582, %v905, 0
        %v1350 = vsel %vm582, %v906, 0
        %v1353 = vsel %vm582, %v907, 0
        %v1356 = vsel %vm582, %v908, 0
        %v1359 = vsel %vm582, %v909, 0
        %1361 = vmatprep.subr.mxu0 0.0
        %1362 = vmatpush1.msra.mxu0 %v1104
        %1363 = vmatprep.subr.mxu0 0.0
        %1364 = vmatpush1.msra.mxu0 %v1105
        %1365 = vmatprep.subr.mxu0 0.0
        %1366 = vmatpush1.msra.mxu0 %v1106
        %1367 = vmatprep.subr.mxu0 0.0
        %1368 = vmatpush1.msra.mxu0 %v1107
        %1369 = vmatprep.subr.mxu0 0.0
        %1370 = vmatpush1.msra.mxu0 %v1108
        %1371 = vmatprep.subr.mxu0 0.0
        %1372 = vmatpush1.msra.mxu0 %v1109
        %1373 = vmatprep.subr.mxu0 0.0
        %1374 = vmatpush1.msra.mxu0 %v1110
        %1375 = vmatprep.subr.mxu0 0.0
        %1376 = vmatpush1.msra.mxu0 %v1111
        %1377 = vmatprep.subr.mxu0 0.0
        %1378 = vmatpush1.msra.mxu0 0.0
        %1379 = vmatprep.subr.mxu0 0.0
        %1380 = vmatpush1.msra.mxu0 0.0
        %1381 = vmatprep.subr.mxu0 0.0
        %1382 = vmatpush1.msra.mxu0 0.0
        %1383 = vmatprep.subr.mxu0 0.0
        %1384 = vmatpush1.msra.mxu0 0.0
        %1385 = vmatprep.subr.mxu0 0.0
        %1386 = vmatpush1.msra.mxu0 0.0
        %1387 = vmatprep.subr.mxu0 0.0
        %1388 = vmatpush1.msra.mxu0 0.0
        %1389 = vmatprep.subr.mxu0 0.0
        %1390 = vmatpush1.msra.mxu0 0.0
        %1391 = vmatprep.subr.mxu0 0.0
        %1392 = vmatpush1.msra.mxu0 0.0
        %1393 = vmatprep.subr.mxu0 0.0
        %1394 = vmatpush1.msra.mxu0 0.0
        %1395 = vmatprep.subr.mxu0 0.0
        %1396 = vmatpush1.msra.mxu0 0.0
        %1397 = vmatprep.subr.mxu0 0.0
        %1398 = vmatpush1.msra.mxu0 0.0
        %1399 = vmatprep.subr.mxu0 0.0
        %1400 = vmatpush1.msra.mxu0 0.0
        %1401 = vmatprep.subr.mxu0 0.0
        %1402 = vmatpush1.msra.mxu0 0.0
        %1403 = vmatprep.subr.mxu0 0.0
        %1404 = vmatpush1.msra.mxu0 0.0
        %1405 = vmatprep.subr.mxu0 0.0
        %1406 = vmatpush1.msra.mxu0 0.0
        %1407 = vmatprep.subr.mxu0 0.0
        %1408 = vmatpush1.msra.mxu0 0.0
        %1409 = vmatprep.subr.mxu0 0.0
        %1410 = vmatpush1.msra.mxu0 0.0
        %1411 = vmatprep.subr.mxu0 0.0
        %1412 = vmatpush1.msra.mxu0 0.0
        %1413 = vmatprep.subr.mxu0 0.0
        %1414 = vmatpush1.msra.mxu0 0.0
        %1415 = vmatprep.subr.mxu0 0.0
        %1416 = vmatpush1.msra.mxu0 0.0
        %1417 = vmatprep.subr.mxu0 0.0
        %1418 = vmatpush1.msra.mxu0 0.0
        %1419 = vmatprep.subr.mxu0 0.0
        %1420 = vmatpush1.msra.mxu0 0.0
        %1421 = vmatprep.subr.mxu0 0.0
        %1422 = vmatpush1.msra.mxu0 0.0
        %1423 = vmatprep.subr.mxu0 0.0
        %1424 = vmatpush1.msra.mxu0 0.0
        %1425 = vmatprep.mubr.f32.mxu0 0.0
        %1426 = vmatmul.mubr.f32.gmra.mrb[0].mxu0 %v1314
        %v1427 = vpop.f32.mrb[0].mxu0
        %v1428 = vadd.f32 %v1235, %v1427
        %v1429 = vpop.f32.mrb[0].mxu0
        %1430 = vmatprep.mubr.f32.mxu0 0.0
        %1431 = vmatmul.mubr.f32.gmra.mrb[0].mxu0 %v1317
        %v1432 = vpop.f32.mrb[0].mxu0
        %v1433 = vadd.f32 %v1240, %v1432
        %v1434 = vpop.f32.mrb[0].mxu0
        %1435 = vmatprep.mubr.f32.mxu0 0.0
        %1436 = vmatmul.mubr.f32.gmra.mrb[0].mxu0 %v1320
        %v1437 = vpop.f32.mrb[0].mxu0
        %v1438 = vadd.f32 %v1245, %v1437
        %v1439 = vpop.f32.mrb[0].mxu0
        %1440 = vmatprep.mubr.f32.mxu0 0.0
        %1441 = vmatmul.mubr.f32.gmra.mrb[0].mxu0 %v1323
        %v1442 = vpop.f32.mrb[0].mxu0
        %v1443 = vadd.f32 %v1250, %v1442
        %v1444 = vpop.f32.mrb[0].mxu0
        %1445 = vmatprep.mubr.f32.mxu0 0.0
        %1446 = vmatmul.mubr.f32.gmra.mrb[0].mxu0 %v1326
        %v1447 = vpop.f32.mrb[0].mxu0
        %v1448 = vadd.f32 %v1255, %v1447
        %v1449 = vpop.f32.mrb[0].mxu0
        %1450 = vmatprep.mubr.f32.mxu0 0.0
        %1451 = vmatmul.mubr.f32.gmra.mrb[0].mxu0 %v1329
        %v1452 = vpop.f32.mrb[0].mxu0
        %v1453 = vadd.f32 %v1260, %v1452
        %v1454 = vpop.f32.mrb[0].mxu0
        %1455 = vmatprep.mubr.f32.mxu0 0.0
        %1456 = vmatmul.mubr.f32.gmra.mrb[0].mxu0 %v1332
        %v1457 = vpop.f32.mrb[0].mxu0
        %v1458 = vadd.f32 %v1265, %v1457
        %v1459 = vpop.f32.mrb[0].mxu0
        %1460 = vmatprep.mubr.f32.mxu0 0.0
        %1461 = vmatmul.mubr.f32.gmra.mrb[0].mxu0 %v1335
        %v1462 = vpop.f32.mrb[0].mxu0
        %v1463 = vadd.f32 %v1270, %v1462
        %v1464 = vpop.f32.mrb[0].mxu0
        %1465 = vmatprep.mubr.f32.mxu0 0.0
        %1466 = vmatmul.mubr.f32.gmra.mrb[0].mxu0 %v1338
        %v1467 = vpop.f32.mrb[0].mxu0
        %v1468 = vadd.f32 %v1275, %v1467
        %v1469 = vpop.f32.mrb[0].mxu0
        %1470 = vmatprep.mubr.f32.mxu0 0.0
        %1471 = vmatmul.mubr.f32.gmra.mrb[0].mxu0 %v1341
        %v1472 = vpop.f32.mrb[0].mxu0
        %v1473 = vadd.f32 %v1280, %v1472
        %v1474 = vpop.f32.mrb[0].mxu0
        %1475 = vmatprep.mubr.f32.mxu0 0.0
        %1476 = vmatmul.mubr.f32.gmra.mrb[0].mxu0 %v1344
        %v1477 = vpop.f32.mrb[0].mxu0
        %v1478 = vadd.f32 %v1285, %v1477
        %v1479 = vpop.f32.mrb[0].mxu0
        %1480 = vmatprep.mubr.f32.mxu0 0.0
        %1481 = vmatmul.mubr.f32.gmra.mrb[0].mxu0 %v1347
        %v1482 = vpop.f32.mrb[0].mxu0
        %v1483 = vadd.f32 %v1290, %v1482
        %v1484 = vpop.f32.mrb[0].mxu0
        %1485 = vmatprep.mubr.f32.mxu0 0.0
        %1486 = vmatmul.mubr.f32.gmra.mrb[0].mxu0 %v1350
        %v1487 = vpop.f32.mrb[0].mxu0
        %v1488 = vadd.f32 %v1295, %v1487
        %v1489 = vpop.f32.mrb[0].mxu0
        %1490 = vmatprep.mubr.f32.mxu0 0.0
        %1491 = vmatmul.mubr.f32.gmra.mrb[0].mxu0 %v1353
        %v1492 = vpop.f32.mrb[0].mxu0
        %v1493 = vadd.f32 %v1300, %v1492
        %v1494 = vpop.f32.mrb[0].mxu0
        %1495 = vmatprep.mubr.f32.mxu0 0.0
        %1496 = vmatmul.mubr.f32.gmra.mrb[0].mxu0 %v1356
        %v1497 = vpop.f32.mrb[0].mxu0
        %v1498 = vadd.f32 %v1305, %v1497
        %v1499 = vpop.f32.mrb[0].mxu0
        %1500 = vmatprep.mubr.f32.mxu0 0.0
        %1501 = vmatmul.mubr.f32.gmra.mrb[0].mxu0 %v1359
        %v1502 = vpop.f32.mrb[0].mxu0
        %v1503 = vadd.f32 %v1310, %v1502
        %v1504 = vpop.f32.mrb[0].mxu0
        %1505 = vdwg.mxu0
        %v1506 = vadd.f32 %v1428, %v808
        %v1507 = vadd.f32 %v1433, %v813
        %v1508 = vadd.f32 %v1438, %v818
        %v1509 = vadd.f32 %v1443, %v823
        %v1510 = vadd.f32 %v1448, %v828
        %v1511 = vadd.f32 %v1453, %v833
        %v1512 = vadd.f32 %v1458, %v838
        %v1513 = vadd.f32 %v1463, %v843
        %v1514 = vadd.f32 %v1468, %v848
        %v1515 = vadd.f32 %v1473, %v853
        %v1516 = vadd.f32 %v1478, %v858
        %v1517 = vadd.f32 %v1483, %v863
        %v1518 = vadd.f32 %v1488, %v868
        %v1519 = vadd.f32 %v1493, %v873
        %v1520 = vadd.f32 %v1498, %v878
        %v1521 = vadd.f32 %v1503, %v883
        %v1522 = vld [vmem:[#allocation19] sm:$0x1]
        %v1524 = vlaneseq
        %v1525 = vshrl.u32 %v1524, 7
        %v1526 = vsub.s32 0, %v1525
        %v1527 = vrot.slane %v1522, %v1526
        %v1529 = vadd.f32 %v1506, %v1527
        %v1530 = vadd.f32 %v1507, %v1527
        %v1531 = vadd.f32 %v1508, %v1527
        %v1532 = vadd.f32 %v1509, %v1527
        %v1533 = vadd.f32 %v1510, %v1527
        %v1534 = vadd.f32 %v1511, %v1527
        %v1535 = vadd.f32 %v1512, %v1527
        %v1536 = vadd.f32 %v1513, %v1527
        %v1537 = vadd.f32 %v1514, %v1527
        %v1538 = vadd.f32 %v1515, %v1527
        %v1539 = vadd.f32 %v1516, %v1527
        %v1540 = vadd.f32 %v1517, %v1527
        %v1541 = vadd.f32 %v1518, %v1527
        %v1542 = vadd.f32 %v1519, %v1527
        %v1543 = vadd.f32 %v1520, %v1527
        %v1544 = vadd.f32 %v1521, %v1527
        %v1547 = vcombine.high %v656, %v656
        %v1549 = vunpack.c.l.s4 1966171168
        %v1550 = vunpack.c.0.s8 %v1549
        %v1551 = vlaneseq
        %v1552 = vshrl.u32 %v1551, 7
        %v1553 = vsub.s32 %v1550, %v1552
        %v1554 = vrot.slane %v656, %v1553
        %v1556 = vunpack.c.l.s4 1966171168
        %v1557 = vunpack.c.0.s8 %v1556
        %v1558 = vlaneseq
        %v1559 = vshrl.u32 %v1558, 7
        %v1560 = vsub.s32 %v1557, %v1559
        %v1561 = vrot.slane %v1547, %v1560
        %v1562 = vcombine.high %v1554, %v1554
        %v1563 = vcombine.high %v1561, %v1561
        %v1565 = vunpack.c.l.s4 1966171168
        %v1566 = vunpack.c.0.s8 %v1565
        %v1567 = vlaneseq
        %v1568 = vshrl.u32 %v1567, 7
        %v1569 = vsub.s32 %v1566, %v1568
        %v1570 = vrot.slane %v1554, %v1569
        %v1572 = vunpack.c.l.s4 1966171168
        %v1573 = vunpack.c.0.s8 %v1572
        %v1574 = vlaneseq
        %v1575 = vshrl.u32 %v1574, 7
        %v1576 = vsub.s32 %v1573, %v1575
        %v1577 = vrot.slane %v1561, %v1576
        %v1579 = vunpack.c.l.s4 1966171168
        %v1580 = vunpack.c.0.s8 %v1579
        %v1581 = vlaneseq
        %v1582 = vshrl.u32 %v1581, 7
        %v1583 = vsub.s32 %v1580, %v1582
        %v1584 = vrot.slane %v1562, %v1583
        %v1586 = vunpack.c.l.s4 1966171168
        %v1587 = vunpack.c.0.s8 %v1586
        %v1588 = vlaneseq
        %v1589 = vshrl.u32 %v1588, 7
        %v1590 = vsub.s32 %v1587, %v1589
        %v1591 = vrot.slane %v1563, %v1590
        %v1592 = vcombine.high %v1570, %v1570
        %v1593 = vcombine.high %v1577, %v1577
        %v1594 = vcombine.high %v1584, %v1584
        %v1595 = vcombine.high %v1591, %v1591
        %v1596 = vcombine.high %v661, %v661
        %v1598 = vunpack.c.l.s4 1966171168
        %v1599 = vunpack.c.0.s8 %v1598
        %v1600 = vlaneseq
        %v1601 = vshrl.u32 %v1600, 7
        %v1602 = vsub.s32 %v1599, %v1601
        %v1603 = vrot.slane %v661, %v1602
        %v1605 = vunpack.c.l.s4 1966171168
        %v1606 = vunpack.c.0.s8 %v1605
        %v1607 = vlaneseq
        %v1608 = vshrl.u32 %v1607, 7
        %v1609 = vsub.s32 %v1606, %v1608
        %v1610 = vrot.slane %v1596, %v1609
        %v1611 = vcombine.high %v1603, %v1603
        %v1612 = vcombine.high %v1610, %v1610
        %v1614 = vunpack.c.l.s4 1966171168
        %v1615 = vunpack.c.0.s8 %v1614
        %v1616 = vlaneseq
        %v1617 = vshrl.u32 %v1616, 7
        %v1618 = vsub.s32 %v1615, %v1617
        %v1619 = vrot.slane %v1603, %v1618
        %v1621 = vunpack.c.l.s4 1966171168
        %v1622 = vunpack.c.0.s8 %v1621
        %v1623 = vlaneseq
        %v1624 = vshrl.u32 %v1623, 7
        %v1625 = vsub.s32 %v1622, %v1624
        %v1626 = vrot.slane %v1610, %v1625
        %v1628 = vunpack.c.l.s4 1966171168
        %v1629 = vunpack.c.0.s8 %v1628
        %v1630 = vlaneseq
        %v1631 = vshrl.u32 %v1630, 7
        %v1632 = vsub.s32 %v1629, %v1631
        %v1633 = vrot.slane %v1611, %v1632
        %v1635 = vunpack.c.l.s4 1966171168
        %v1636 = vunpack.c.0.s8 %v1635
        %v1637 = vlaneseq
        %v1638 = vshrl.u32 %v1637, 7
        %v1639 = vsub.s32 %v1636, %v1638
        %v1640 = vrot.slane %v1612, %v1639
        %v1641 = vcombine.high %v1619, %v1619
        %v1642 = vcombine.high %v1626, %v1626
        %v1643 = vcombine.high %v1633, %v1633
        %v1644 = vcombine.high %v1640, %v1640
        %v1645 = vlaneseq
        %v1646 = vshrl.u32 %v1645, 7
        %v1647 = vsub.s32 0, %v1646
        %v1648 = vrot.slane %v1570, %v1647
        %v1649 = vlaneseq
        %v1650 = vshrl.u32 %v1649, 7
        %v1651 = vsub.s32 0, %v1650
        %v1652 = vrot.slane %v1584, %v1651
        %v1653 = vlaneseq
        %v1654 = vshrl.u32 %v1653, 7
        %v1655 = vsub.s32 0, %v1654
        %v1656 = vrot.slane %v1592, %v1655
        %v1657 = vlaneseq
        %v1658 = vshrl.u32 %v1657, 7
        %v1659 = vsub.s32 0, %v1658
        %v1660 = vrot.slane %v1594, %v1659
        %v1661 = vlaneseq
        %v1662 = vshrl.u32 %v1661, 7
        %v1663 = vsub.s32 0, %v1662
        %v1664 = vrot.slane %v1577, %v1663
        %v1665 = vlaneseq
        %v1666 = vshrl.u32 %v1665, 7
        %v1667 = vsub.s32 0, %v1666
        %v1668 = vrot.slane %v1591, %v1667
        %v1669 = vlaneseq
        %v1670 = vshrl.u32 %v1669, 7
        %v1671 = vsub.s32 0, %v1670
        %v1672 = vrot.slane %v1593, %v1671
        %v1673 = vlaneseq
        %v1674 = vshrl.u32 %v1673, 7
        %v1675 = vsub.s32 0, %v1674
        %v1676 = vrot.slane %v1595, %v1675
        %v1677 = vlaneseq
        %v1678 = vshrl.u32 %v1677, 7
        %v1679 = vsub.s32 0, %v1678
        %v1680 = vrot.slane %v1619, %v1679
        %v1681 = vlaneseq
        %v1682 = vshrl.u32 %v1681, 7
        %v1683 = vsub.s32 0, %v1682
        %v1684 = vrot.slane %v1633, %v1683
        %v1685 = vlaneseq
        %v1686 = vshrl.u32 %v1685, 7
        %v1687 = vsub.s32 0, %v1686
        %v1688 = vrot.slane %v1641, %v1687
        %v1689 = vlaneseq
        %v1690 = vshrl.u32 %v1689, 7
        %v1691 = vsub.s32 0, %v1690
        %v1692 = vrot.slane %v1643, %v1691
        %v1693 = vlaneseq
        %v1694 = vshrl.u32 %v1693, 7
        %v1695 = vsub.s32 0, %v1694
        %v1696 = vrot.slane %v1626, %v1695
        %v1697 = vlaneseq
        %v1698 = vshrl.u32 %v1697, 7
        %v1699 = vsub.s32 0, %v1698
        %v1700 = vrot.slane %v1640, %v1699
        %v1701 = vlaneseq
        %v1702 = vshrl.u32 %v1701, 7
        %v1703 = vsub.s32 0, %v1702
        %v1704 = vrot.slane %v1642, %v1703
        %v1705 = vlaneseq
        %v1706 = vshrl.u32 %v1705, 7
        %v1707 = vsub.s32 0, %v1706
        %v1708 = vrot.slane %v1644, %v1707
        %v1725 = vadd.f32 %v1529, %v1648
        %v1726 = vadd.f32 %v1530, %v1652
        %v1727 = vadd.f32 %v1531, %v1656
        %v1728 = vadd.f32 %v1532, %v1660
        %v1729 = vadd.f32 %v1533, %v1664
        %v1730 = vadd.f32 %v1534, %v1668
        %v1731 = vadd.f32 %v1535, %v1672
        %v1732 = vadd.f32 %v1536, %v1676
        %v1733 = vadd.f32 %v1537, %v1680
        %v1734 = vadd.f32 %v1538, %v1684
        %v1735 = vadd.f32 %v1539, %v1688
        %v1736 = vadd.f32 %v1540, %v1692
        %v1737 = vadd.f32 %v1541, %v1696
        %v1738 = vadd.f32 %v1542, %v1700
        %v1739 = vadd.f32 %v1543, %v1704
        %v1740 = vadd.f32 %v1544, %v1708
        %vm1741 = vcmp.gt.f32.partialorder %v1725, 0.0
        %vm1742 = vcmp.gt.f32.partialorder %v1726, 0.0
        %vm1743 = vcmp.gt.f32.partialorder %v1727, 0.0
        %vm1744 = vcmp.gt.f32.partialorder %v1728, 0.0
        %vm1745 = vcmp.gt.f32.partialorder %v1729, 0.0
        %vm1746 = vcmp.gt.f32.partialorder %v1730, 0.0
        %vm1747 = vcmp.gt.f32.partialorder %v1731, 0.0
        %vm1748 = vcmp.gt.f32.partialorder %v1732, 0.0
        %vm1749 = vcmp.gt.f32.partialorder %v1733, 0.0
        %vm1750 = vcmp.gt.f32.partialorder %v1734, 0.0
        %vm1751 = vcmp.gt.f32.partialorder %v1735, 0.0
        %vm1752 = vcmp.gt.f32.partialorder %v1736, 0.0
        %vm1753 = vcmp.gt.f32.partialorder %v1737, 0.0
        %vm1754 = vcmp.gt.f32.partialorder %v1738, 0.0
        %vm1755 = vcmp.gt.f32.partialorder %v1739, 0.0
        %vm1756 = vcmp.gt.f32.partialorder %v1740, 0.0
        %v1757 = vmul.f32 %v1725, 0.01
        %v1758 = vmul.f32 %v1726, 0.01
        %v1759 = vmul.f32 %v1727, 0.01
        %v1760 = vmul.f32 %v1728, 0.01
        %v1761 = vmul.f32 %v1729, 0.01
        %v1762 = vmul.f32 %v1730, 0.01
        %v1763 = vmul.f32 %v1731, 0.01
        %v1764 = vmul.f32 %v1732, 0.01
        %v1765 = vmul.f32 %v1733, 0.01
        %v1766 = vmul.f32 %v1734, 0.01
        %v1767 = vmul.f32 %v1735, 0.01
        %v1768 = vmul.f32 %v1736, 0.01
        %v1769 = vmul.f32 %v1737, 0.01
        %v1770 = vmul.f32 %v1738, 0.01
        %v1771 = vmul.f32 %v1739, 0.01
        %v1772 = vmul.f32 %v1740, 0.01
        %v1773 = vsel %vm1741, %v1725, %v1757
        %v1774 = vsel %vm1742, %v1726, %v1758
        %v1775 = vsel %vm1743, %v1727, %v1759
        %v1776 = vsel %vm1744, %v1728, %v1760
        %v1777 = vsel %vm1745, %v1729, %v1761
        %v1778 = vsel %vm1746, %v1730, %v1762
        %v1779 = vsel %vm1747, %v1731, %v1763
        %v1780 = vsel %vm1748, %v1732, %v1764
        %v1781 = vsel %vm1749, %v1733, %v1765
        %v1782 = vsel %vm1750, %v1734, %v1766
        %v1783 = vsel %vm1751, %v1735, %v1767
        %v1784 = vsel %vm1752, %v1736, %v1768
        %v1785 = vsel %vm1753, %v1737, %v1769
        %v1786 = vsel %vm1754, %v1738, %v1770
        %v1787 = vsel %vm1755, %v1739, %v1771
        %v1788 = vsel %vm1756, %v1740, %v1772
        %v1789 = vld [vmem:[#allocation21] sm:$0x1]
        %v1791 = vlaneseq
        %v1792 = vshrl.u32 %v1791, 7
        %v1793 = vsub.s32 0, %v1792
        %v1794 = vrot.slane %v1789, %v1793
        %v1796 = vmul.f32 %v1773, %v1794
        %v1797 = vmul.f32 %v1774, %v1794
        %v1798 = vmul.f32 %v1775, %v1794
        %v1799 = vmul.f32 %v1776, %v1794
        %v1800 = vmul.f32 %v1777, %v1794
        %v1801 = vmul.f32 %v1778, %v1794
        %v1802 = vmul.f32 %v1779, %v1794
        %v1803 = vmul.f32 %v1780, %v1794
        %v1804 = vmul.f32 %v1781, %v1794
        %v1805 = vmul.f32 %v1782, %v1794
        %v1806 = vmul.f32 %v1783, %v1794
        %v1807 = vmul.f32 %v1784, %v1794
        %v1808 = vmul.f32 %v1785, %v1794
        %v1809 = vmul.f32 %v1786, %v1794
        %v1810 = vmul.f32 %v1787, %v1794
        %v1811 = vmul.f32 %v1788, %v1794
        %v1812 = vsel %vm582, %v1796, 0.0
        %1813 = vadd.xlane.f32.xlu0 %v1812
        %v1814 = vpop.xlane.xlu0 %1813
        %v1815 = vsel %vm582, %v1797, 0.0
        %1816 = vadd.xlane.f32.xlu0 %v1815
        %v1817 = vpop.xlane.xlu0 %1816
        %v1818 = vsel %vm582, %v1798, 0.0
        %1819 = vadd.xlane.f32.xlu0 %v1818
        %v1820 = vpop.xlane.xlu0 %1819
        %v1821 = vsel %vm582, %v1799, 0.0
        %1822 = vadd.xlane.f32.xlu0 %v1821
        %v1823 = vpop.xlane.xlu0 %1822
        %v1824 = vsel %vm582, %v1800, 0.0
        %1825 = vadd.xlane.f32.xlu0 %v1824
        %v1826 = vpop.xlane.xlu0 %1825
        %v1827 = vsel %vm582, %v1801, 0.0
        %1828 = vadd.xlane.f32.xlu0 %v1827
        %v1829 = vpop.xlane.xlu0 %1828
        %v1830 = vsel %vm582, %v1802, 0.0
        %1831 = vadd.xlane.f32.xlu0 %v1830
        %v1832 = vpop.xlane.xlu0 %1831
        %v1833 = vsel %vm582, %v1803, 0.0
        %1834 = vadd.xlane.f32.xlu0 %v1833
        %v1835 = vpop.xlane.xlu0 %1834
        %v1836 = vsel %vm582, %v1804, 0.0
        %1837 = vadd.xlane.f32.xlu0 %v1836
        %v1838 = vpop.xlane.xlu0 %1837
        %v1839 = vsel %vm582, %v1805, 0.0
        %1840 = vadd.xlane.f32.xlu0 %v1839
        %v1841 = vpop.xlane.xlu0 %1840
        %v1842 = vsel %vm582, %v1806, 0.0
        %1843 = vadd.xlane.f32.xlu0 %v1842
        %v1844 = vpop.xlane.xlu0 %1843
        %v1845 = vsel %vm582, %v1807, 0.0
        %1846 = vadd.xlane.f32.xlu0 %v1845
        %v1847 = vpop.xlane.xlu0 %1846
        %v1848 = vsel %vm582, %v1808, 0.0
        %1849 = vadd.xlane.f32.xlu0 %v1848
        %v1850 = vpop.xlane.xlu0 %1849
        %v1851 = vsel %vm582, %v1809, 0.0
        %1852 = vadd.xlane.f32.xlu0 %v1851
        %v1853 = vpop.xlane.xlu0 %1852
        %v1854 = vsel %vm582, %v1810, 0.0
        %1855 = vadd.xlane.f32.xlu0 %v1854
        %v1856 = vpop.xlane.xlu0 %1855
        %v1857 = vsel %vm582, %v1811, 0.0
        %1858 = vadd.xlane.f32.xlu0 %v1857
        %v1859 = vpop.xlane.xlu0 %1858
        %s1860 = sld [smem:[#allocation6]]
        %v1861 = vstv %s1860
        %v1862 = vadd.f32 %v1814, %v1861
        %v1863 = vadd.f32 %v1817, %v1861
        %v1864 = vadd.f32 %v1820, %v1861
        %v1865 = vadd.f32 %v1823, %v1861
        %v1866 = vadd.f32 %v1826, %v1861
        %v1867 = vadd.f32 %v1829, %v1861
        %v1868 = vadd.f32 %v1832, %v1861
        %v1869 = vadd.f32 %v1835, %v1861
        %v1870 = vadd.f32 %v1838, %v1861
        %v1871 = vadd.f32 %v1841, %v1861
        %v1872 = vadd.f32 %v1844, %v1861
        %v1873 = vadd.f32 %v1847, %v1861
        %v1874 = vadd.f32 %v1850, %v1861
        %v1875 = vadd.f32 %v1853, %v1861
        %v1876 = vadd.f32 %v1856, %v1861
        %v1877 = vadd.f32 %v1859, %v1861
        %v1878 = vld [vmem:[%s474] sm:$0xff]
        %v1879 = vld [vmem:[%s474 + $0x8] sm:$0xff]
        %v1896 = vlaneseq
        %v1897 = vand.u32 %v1896, 127
        %v1898 = vlaneseq
        %v1899 = vshrl.u32 %v1898, 7
        %v1900 = vsub.s32 %v1897, %v1899
        %v1901 = vrot.slane %v1862, %v1900
        %v1902 = vlaneseq
        %v1903 = vshrl.u32 %v1902, 7
        %v1904 = vsub.s32 %v1897, %v1903
        %v1905 = vrot.slane %v1863, %v1904
        %v1906 = vlaneseq
        %v1907 = vshrl.u32 %v1906, 7
        %v1908 = vsub.s32 %v1897, %v1907
        %v1909 = vrot.slane %v1864, %v1908
        %v1910 = vlaneseq
        %v1911 = vshrl.u32 %v1910, 7
        %v1912 = vsub.s32 %v1897, %v1911
        %v1913 = vrot.slane %v1865, %v1912
        %v1914 = vlaneseq
        %v1915 = vshrl.u32 %v1914, 7
        %v1916 = vsub.s32 %v1897, %v1915
        %v1917 = vrot.slane %v1866, %v1916
        %v1918 = vlaneseq
        %v1919 = vshrl.u32 %v1918, 7
        %v1920 = vsub.s32 %v1897, %v1919
        %v1921 = vrot.slane %v1867, %v1920
        %v1922 = vlaneseq
        %v1923 = vshrl.u32 %v1922, 7
        %v1924 = vsub.s32 %v1897, %v1923
        %v1925 = vrot.slane %v1868, %v1924
        %v1926 = vlaneseq
        %v1927 = vshrl.u32 %v1926, 7
        %v1928 = vsub.s32 %v1897, %v1927
        %v1929 = vrot.slane %v1869, %v1928
        %v1930 = vlaneseq
        %v1931 = vshrl.u32 %v1930, 7
        %v1932 = vsub.s32 %v1897, %v1931
        %v1933 = vrot.slane %v1870, %v1932
        %v1934 = vlaneseq
        %v1935 = vshrl.u32 %v1934, 7
        %v1936 = vsub.s32 %v1897, %v1935
        %v1937 = vrot.slane %v1871, %v1936
        %v1938 = vlaneseq
        %v1939 = vshrl.u32 %v1938, 7
        %v1940 = vsub.s32 %v1897, %v1939
        %v1941 = vrot.slane %v1872, %v1940
        %v1942 = vlaneseq
        %v1943 = vshrl.u32 %v1942, 7
        %v1944 = vsub.s32 %v1897, %v1943
        %v1945 = vrot.slane %v1873, %v1944
        %v1946 = vlaneseq
        %v1947 = vshrl.u32 %v1946, 7
        %v1948 = vsub.s32 %v1897, %v1947
        %v1949 = vrot.slane %v1874, %v1948
        %v1950 = vlaneseq
        %v1951 = vshrl.u32 %v1950, 7
        %v1952 = vsub.s32 %v1897, %v1951
        %v1953 = vrot.slane %v1875, %v1952
        %v1954 = vlaneseq
        %v1955 = vshrl.u32 %v1954, 7
        %v1956 = vsub.s32 %v1897, %v1955
        %v1957 = vrot.slane %v1876, %v1956
        %v1958 = vlaneseq
        %v1959 = vshrl.u32 %v1958, 7
        %v1960 = vsub.s32 %v1897, %v1959
        %v1961 = vrot.slane %v1877, %v1960
        %vm1962 = vcmask 1041409
        %v1963 = vsel %vm1962, %v1905, %v1901
        %vm1964 = vcmask 1042434
        %v1965 = vsel %vm1964, %v1909, %v1963
        %vm1966 = vcmask 1043459
        %v1967 = vsel %vm1966, %v1913, %v1965
        %vm1968 = vcmask 1044484
        %v1969 = vsel %vm1968, %v1917, %v1967
        %vm1970 = vcmask 1045509
        %v1971 = vsel %vm1970, %v1921, %v1969
        %vm1972 = vcmask 1046534
        %v1973 = vsel %vm1972, %v1925, %v1971
        %vm1974 = vcmask 1047559
        %v1975 = vsel %vm1974, %v1929, %v1973
        %v1976 = vsel %vm1962, %v1937, %v1933
        %v1977 = vsel %vm1964, %v1941, %v1976
        %v1978 = vsel %vm1966, %v1945, %v1977
        %v1979 = vsel %vm1968, %v1949, %v1978
        %v1980 = vsel %vm1970, %v1953, %v1979
        %v1981 = vsel %vm1972, %v1957, %v1980
        %v1982 = vsel %vm1974, %v1961, %v1981
        %v1985 = vadd.f32 %v1878, %v1975
        %v1986 = vadd.f32 %v1879, %v1982
        %1989 = vrot.lane.b32.xlu0 %v1985, 1
        %v1990 = vpop.permute.xlu0 %1989
        %1991 = vrot.lane.b32.xlu0 %v1986, 1
        %v1992 = vpop.permute.xlu0 %1991
        %vm1995 = vcmask 72712
        %1996 = vst.msk [vmem:[%s544] sm:$0xff] %vm1995, %v1990
        %1997 = vst.msk [vmem:[%s544 + $0x8] sm:$0xff] %vm1995, %v1992
        %vm1998 = vcmask 7168
        %1999 = vst.msk [vmem:[%s544] sm:$0xff] %vm1998, 1e-07
        %2000 = vst.msk [vmem:[%s544 + $0x8] sm:$0xff] %vm1998, 1e-07
        %s2001 = sand.u32 %s273, 1
        %s2002 = scalar_lea.sflag [#allocation9], %s2001
        %s2003 = sand.u32 %s273, 1
        %s2004 = smul.addr %s2003, 16
        %s2005 = scalar_lea.vmem [#allocation22], %s2004
        // Predicated region
        $region115: #{fine_scorer_forward.1} parent=59 // pred_check
          %p2006 = pneg %p283
        $region116: #{fine_scorer_forward.1} parent=59 // pred_check_branch
          %2008 = sbr.rel (%p2006) target = $region118
        $region117: #{fine_scorer_forward.1} parent=59 // pred_region
          %s2009 = smul.u32 2, %s40
          %s2011 = ssub.s32 256, 256
          %2012 = vsyncadd %s2002, %s2011
          %s2013 = smul.addr %s2009, 128
          %s2014 = scalar_lea.hbm %s12, %s2013
          %s2015 = sshll.u32 %s2005, 4
          %s2016 = int_to_ptr.vmem [resolvable:$true] %s2015
          %2021 = dma.vmem_to_hbm [thread:$0]  %s2016, 256, %s2014, %s2002, 128, 128, 8
        $region118: #{fine_scorer_forward.1} parent=59 // pred_fallthru
          _
      $region60: #{fine_scorer_forward.1} parent=5 // pred_fallthru
        _
      %p2022 = scmp.le.s32.totalorder 2, %s35
      // Predicated region
      $region119: #{fine_scorer_forward.1} parent=5 // pred_check
        %p2023 = pneg %p2022
      $region120: #{fine_scorer_forward.1} parent=5 // pred_check_branch
        %2025 = sbr.rel (%p2023) target = $region122
      $region121: #{fine_scorer_forward.1} parent=5 // pred_region
        %s2026 = ssub.s32 %s35, 2
        // Predicated region
        $region123: #{fine_scorer_forward.1} parent=121 // pred_check
          %p2027 = pneg %p289
        $region124: #{fine_scorer_forward.1} parent=121 // pred_check_branch
          %2029 = sbr.rel (%p2027) target = $region126
        $region125: #{fine_scorer_forward.1} parent=121 // pred_region
          %s2030 = sand.u32 %s274, 1
          %s2031 = scalar_lea.sflag [#allocation9], %s2030
          %s2032 = sand.u32 %s274, 1
          %s2033 = smul.addr %s2032, 16
          %s2034 = scalar_lea.vmem [#allocation22], %s2033
          %2035 = dma.done %s2031, 256
        $region126: #{fine_scorer_forward.1} parent=121 // pred_fallthru
          _
      $region122: #{fine_scorer_forward.1} parent=5 // pred_fallthru
        _
    $region6: #{fine_scorer_forward.1} parent=1 // loop_footer
      %s39 = sadd.s32 1, %s35
    $region7: #{fine_scorer_forward.1} parent=1 // loop_footer_branch
      %34 = sbr.rel target = $region3
    $region8: #{fine_scorer_forward.1} parent=1 // loop_exit
      _
    %2036 = vsyncpa [#allocation8], 1
    %s2037 = scalar_lea.sflag [#allocation8], 1
    %2038 = vsyncpa %s2037, 1
    %2039 = vsyncpa [#allocation11], 1
    %s2040 = scalar_lea.sflag [#allocation11], 1
    %2041 = vsyncpa %s2040, 1
    %2042 = vsyncpa [#allocation14], 1
    %2043 = vsyncpa [#allocation17], 1
    %2044 = vsyncpa [#allocation20], 1
    %2045 = vsyncpa [#allocation9], 1
    %s2046 = scalar_lea.sflag [#allocation9], 1
    %2047 = vsyncpa %s2046, 1
  %2048 = vsyncmov [#allocation3]
  %s2049 = vpop.sfrf %2048
  %p2050 = scmp.eq.s32.totalorder %s2049, 0
  %p2051 = pneg %p2050
  %2053 = shalt.err (%p2051)

</llo_original>
